<compile_context>
chip_gen: v7x
topology: tpu7x:2x2x1
jax: 0.10.0
libtpu: 0.0.40
codegen_flags: <defaults>
</compile_context>

<pallas_src>
import functools

import jax
import jax.numpy as jnp
from jax.experimental import pallas as pl
from jax.experimental.pallas import tpu as pltpu


def _round_up(x, m):
    return (x + m - 1) // m * m


def _vmem_budget_bytes():
    """75% of per-core VMEM (conservative 64 MiB fallback if query fails)."""
    try:
        cap = int(pltpu.get_tpu_info().vmem_capacity_bytes)
    except Exception:
        cap = 64 * 1024 * 1024
    return max(int(0.75 * cap), 32 * 1024 * 1024)


_TM_CANDS = (512, 384, 256, 128)
_TK_CANDS = (1024, 768, 512, 384, 256, 128)


def _largest_divisor(n_pad, cands):
    for d in cands:
        if d <= n_pad and n_pad % d == 0:
            return d
    return 128


def _choose_geometry(n, fp, vmem_budget):
    """Return (n_pad, tm, tk, resident_a)."""
    base = _round_up(max(n, 128), 128)

    # Pick the 128-multiple padding that yields the largest streamed A_hat
    # tile while keeping the padded-A traffic within ~12% of the minimum.
    best = None
    cand = base
    while cand * cand <= 1.12 * base * base:
        tm = _largest_divisor(cand, _TM_CANDS)
        tk = _largest_divisor(cand, _TK_CANDS)
        score = (tm * tk, -cand)
        if best is None or score > best[0]:
            best = (score, cand, tm, tk)
        cand += 128
    _, n_pad, tm, tk = best

    # Small/medium graphs: keep A_hat fully VMEM-resident (HBM-streamed once
    # instead of once per layer) and do the whole reduction per row tile.
    bf16, f32 = 2, 4
    resident_bytes = 2 * n_pad * n_pad * bf16          # assume double-buffered
    others = (4 * n_pad * fp * bf16                    # X0 input + H ping/pong
              + 2 * 3 * fp * fp * bf16                 # resident weights
              + 2 * tm * fp * f32                      # output block
              + 2 * tm * n_pad * bf16                  # possible slice copy
              + 4 * 1024 * 1024)                       # headroom
    resident_a = resident_bytes + others <= vmem_budget
    if resident_a:
        tk = n_pad                                     # full reduction per step
    return n_pad, tm, tk, resident_a


def _vmem_limit_bytes(n_pad, fp, tm, tk, resident_a, budget):
    bf16, f32 = 2, 4
    if resident_a:
        a_bytes = 2 * n_pad * n_pad * bf16 + 2 * tm * n_pad * bf16
    else:
        a_bytes = 2 * tm * tk * bf16
    need = (a_bytes
            + 2 * n_pad * fp * bf16        # resident X0 input
            + 2 * n_pad * fp * bf16        # H ping/pong scratches
            + 2 * 3 * fp * fp * bf16       # resident weights
            + 2 * 8 * fp * f32             # per-layer bias block (padded)
            + 2 * tm * fp * f32)           # output block (f32 accumulator)
    need = int(need * 1.25) + (4 << 20)
    return int(min(max(need, 16 << 20), budget))


def _fused_gcn_kernel(a_ref, x0_ref, w_ref, b_ref, o_ref, h_a, h_b, *,
                      out_channels, tm, tk, resident_a):
    l = pl.program_id(0)          # layer
    i = pl.program_id(1)          # row tile of A_hat / output
    k = pl.program_id(2)          # reduction tile (columns of A_hat)
    nk = pl.num_programs(2)
    n_layers = pl.num_programs(0)

    ih = pl.multiple_of(i * tm, tm)
    kh = pl.multiple_of(k * tk, tk)
    l_even = (l % 2) == 0          # even layers read h_a, odd layers read h_b

    # ---- once per FORWARD (not per layer): H_0 = X0 @ W_0 -------------------
    @pl.when(jnp.logical_and(l == 0, jnp.logical_and(i == 0, k == 0)))
    def _():
        h_a[...] = jnp.dot(x0_ref[...], w_ref[0],
                           preferred_element_type=jnp.float32).astype(h_a.dtype)

    # ---- reduction init: the output block is the f32 accumulator ------------
    # (out index map (i, 0) is constant across k, so the block stays resident)
    @pl.when(k == 0)
    def _():
        o_ref[...] = jnp.zeros_like(o_ref)

    # ---- aggregation: o += A_hat[i-tile, k-tile] @ H_l[k-tile, :]  (MXU) -----
    if resident_a:
        a_tile = a_ref[pl.ds(ih, tm), :]      # tk == n_pad on this path
    else:
        a_tile = a_ref[...]

    @pl.when(l_even)
    def _():
        o_ref[...] += jnp.dot(a_tile, h_a[pl.ds(kh, tk), :],
                              preferred_element_type=jnp.float32)

    @pl.when(jnp.logical_not(l_even))
    def _():
        o_ref[...] += jnp.dot(a_tile, h_b[pl.ds(kh, tk), :],
                              preferred_element_type=jnp.float32)

    # ---- epilogue, once per (layer, row tile) --------------------------------
    @pl.when(k == nk - 1)
    def _():
        h = o_ref[...] + b_ref[0]             # [tm, fp] f32

        @pl.when(l < n_layers - 1)
        def _():
            # ReLU + fused next-layer feature transform for this row tile:
            # H_{l+1}[i-tile] = relu(h) @ W_{l+1}, written to the other buffer.
            act = jnp.maximum(h, 0.0).astype(jnp.bfloat16)
            h_next = jnp.dot(act, w_ref[l + 1],
                             preferred_element_type=jnp.float32
                             ).astype(jnp.bfloat16)

            @pl.when(l_even)
            def _():
                h_b[pl.ds(ih, tm), :] = h_next

            @pl.when(jnp.logical_not(l_even))
            def _():
                h_a[pl.ds(ih, tm), :] = h_next

        @pl.when(l == n_layers - 1)
        def _():
            # masked, numerically stable log_softmax over the real classes only
            lane = jax.lax.broadcasted_iota(jnp.int32, h.shape, 1)
            hm = jnp.where(lane < out_channels, h, -1e30)
            m = jnp.max(hm, axis=-1, keepdims=True)
            s = hm - m
            lse = jnp.log(jnp.sum(jnp.exp(s), axis=-1, keepdims=True))
            o_ref[...] = (s - lse).astype(o_ref.dtype)


def pyg_net_forward(x, a_hat, params):
    """relu(gcn1) -> relu(gcn2) -> gcn3 -> log_softmax(dim=1), one fused kernel."""
    n, f_in = x.shape
    n_layers = len(params)
    f_dims = [f_in] + [w.shape[1] for w, _ in params]
    f_out = f_dims[-1]
    fp = _round_up(max(f_dims), 128)            # lane-dense feature width

    budget = _vmem_budget_bytes()
    n_pad, tm, tk, resident_a = _choose_geometry(n, fp, budget)

    # zero-pad everything (zeros are inert through matmul / bias / relu)
    a_p = jnp.zeros((n_pad, n_pad), jnp.bfloat16)
    a_p = a_p.at[:n, :n].set(a_hat.astype(jnp.bfloat16))
    x_p = jnp.zeros((n_pad, fp), jnp.bfloat16)
    x_p = x_p.at[:n, :f_in].set(x.astype(jnp.bfloat16))
    w_p = jnp.zeros((n_layers, fp, fp), jnp.bfloat16)
    b_p = jnp.zeros((n_layers, 1, fp), jnp.float32)
    for li, (w, b) in enumerate(params):
        w_p = w_p.at[li, :w.shape[0], :w.shape[1]].set(w.astype(jnp.bfloat16))
        b_p = b_p.at[li, 0, :b.shape[0]].set(b.astype(jnp.float32))

    grid = (n_layers, n_pad // tm, n_pad // tk)
    kernel = functools.partial(_fused_gcn_kernel, out_channels=f_out,
                               tm=tm, tk=tk, resident_a=resident_a)

    if resident_a:
        # DMA'd once (constant block index), then sliced in-kernel.
        a_spec = pl.BlockSpec((n_pad, n_pad), lambda l, i, k: (0, 0))
    else:
        # ~tm*tk*2 bytes streamed per grid step (double-buffered by Pallas).
        a_spec = pl.BlockSpec((tm, tk), lambda l, i, k: (i, k))

    out = pl.pallas_call(
        kernel,
        out_shape=jax.ShapeDtypeStruct((n_pad, fp), jnp.float32),
        grid_spec=pltpu.PrefetchScalarGridSpec(
            num_scalar_prefetch=0,
            grid=grid,
            in_specs=[
                a_spec,                                                 # A_hat
                pl.BlockSpec((n_pad, fp), lambda l, i, k: (0, 0)),      # X0 (resident)
                pl.BlockSpec((n_layers, fp, fp), lambda l, i, k: (0, 0, 0)),  # all W (resident)
                pl.BlockSpec((1, 1, fp), lambda l, i, k: (l, 0, 0)),    # b_l
            ],
            out_specs=pl.BlockSpec((tm, fp), lambda l, i, k: (i, 0)),
            scratch_shapes=[
                pltpu.VMEM((n_pad, fp), jnp.bfloat16),   # H ping (layers 0, 2)
                pltpu.VMEM((n_pad, fp), jnp.bfloat16),   # H pong (layer 1)
            ]),
        compiler_params=pltpu.CompilerParams(
            dimension_semantics=("arbitrary", "arbitrary", "arbitrary"),
            vmem_limit_bytes=_vmem_limit_bytes(n_pad, fp, tm, tk,
                                               resident_a, budget)),
    )(a_p, x_p, w_p, b_p)

    return out[:n, :f_out]


def gcn_normalize(adj):
    """A_hat = D^{-1/2} (A + I) D^{-1/2}  (plain-JAX preprocessing)."""
    n = adj.shape[0]
    a = adj + jnp.eye(n, dtype=adj.dtype)
    deg = jnp.sum(a, axis=1)
    d_inv_sqrt = jnp.where(deg > 0, jax.lax.rsqrt(deg), 0.0)
    return a * d_inv_sqrt[:, None] * d_inv_sqrt[None, :]


def init_params(key, in_channels, hidden_channels, out_channels):
    """Deterministic Glorot-uniform weights + zero bias (GCNConv defaults)."""
    dims = [(in_channels, hidden_channels),
            (hidden_channels, hidden_channels),
            (hidden_channels, out_channels)]
    params = []
    for i, (fi, fo) in enumerate(dims):
        k = jax.random.fold_in(key, i)
        limit = (6.0 / (fi + fo)) ** 0.5
        w = jax.random.uniform(k, (fi, fo), jnp.float32, -limit, limit)
        b = jnp.zeros((fo,), jnp.float32)
        params.append((w, b))
    return params


def _reference_forward(x, a_hat, params):
    """Pure-JAX f32 reference of the PYG_Net forward."""
    h = x
    for li, (w, b) in enumerate(params):
        h = a_hat @ (h @ w) + b
        if li < len(params) - 1:
            h = jnp.maximum(h, 0.0)
    return jax.nn.log_softmax(h, axis=1)


if __name__ == "__main__":
    key = jax.random.PRNGKey(0)
    k_x, k_adj, k_p = jax.random.split(key, 3)

    num_nodes = 16
    in_channels, hidden_channels, out_channels = 8, 32, 8

    # node features [N, F_in]
    x = jax.random.normal(k_x, (num_nodes, in_channels), jnp.float32)

    # random symmetric 0/1 adjacency (self loops added in gcn_normalize)
    upper = (jax.random.uniform(k_adj, (num_nodes, num_nodes)) < 0.3).astype(jnp.float32)
    adj = jnp.triu(upper, k=1)
    adj = adj + adj.T
    a_hat = gcn_normalize(adj)

    params = init_params(k_p, in_channels, hidden_channels, out_channels)

    fwd = jax.jit(pyg_net_forward)
    out = fwd(x, a_hat, params)
    jax.block_until_ready(out)

    assert out.shape == (num_nodes, out_channels)
    # log_softmax rows should sum (in prob space) to ~1
    row_sums = jnp.sum(jnp.exp(out), axis=1)
    assert bool(jnp.all(jnp.abs(row_sums - 1.0) < 1e-3))

    # compare against a pure-JAX f32 reference (bf16 MXU inputs -> loose tol)
    ref = _reference_forward(x, a_hat, params)
    max_err = float(jnp.max(jnp.abs(out - ref)))
    assert max_err < 0.1, f"max |err| = {max_err}"

    print("KERNEL_OK")
</pallas_src>

<mosaic_0001>
module attributes {stable_mosaic.version = 11 : i64} {
  func.func @_fused_gcn_kernel(%arg0: i32, %arg1: i32, %arg2: i32, %arg3: memref<128x128xbf16, #tpu.memory_space<vmem>>, %arg4: memref<128x128xbf16, #tpu.memory_space<vmem>>, %arg5: memref<3x128x128xbf16, #tpu.memory_space<vmem>>, %arg6: memref<1x1x128xf32, #tpu.memory_space<vmem>>, %arg7: memref<128x128xf32, #tpu.memory_space<vmem>>, %arg8: memref<128x128xbf16, #tpu.memory_space<vmem>>, %arg9: memref<128x128xbf16, #tpu.memory_space<vmem>>) attributes {dimension_semantics = [#tpu.dimension_semantics<arbitrary>, #tpu.dimension_semantics<arbitrary>, #tpu.dimension_semantics<arbitrary>], iteration_bounds = array<i64: 3, 1, 1>, scalar_prefetch = 0 : i64, scratch_operands = 2 : i64, tpu.core_type = #tpu.core_type<tc>, window_params = [{pipeline_mode = #tpu.pipeline_mode<synchronous>, transform_indices = @transform_0, window_bounds = array<i64: 128, 128>}, {pipeline_mode = #tpu.pipeline_mode<synchronous>, transform_indices = @transform_1, window_bounds = array<i64: 128, 128>}, {pipeline_mode = #tpu.pipeline_mode<synchronous>, transform_indices = @transform_2, window_bounds = array<i64: 3, 128, 128>}, {transform_indices = @transform_3, window_bounds = array<i64: 1, 1, 128>}, {transform_indices = @transform_4, window_bounds = array<i64: 128, 128>}]} {
    %c128_i32 = arith.constant 128 : i32
    %0 = arith.muli %arg1, %c128_i32 : i32
    %1 = tpu.assume_multiple %0, 128 : i32
    %c128_i32_0 = arith.constant 128 : i32
    %2 = arith.muli %arg2, %c128_i32_0 : i32
    %3 = tpu.assume_multiple %2, 128 : i32
    %c2_i32 = arith.constant 2 : i32
    %c0_i32 = arith.constant 0 : i32
    %4 = arith.cmpi eq, %c2_i32, %c0_i32 : i32
    %c1_i32 = arith.constant 1 : i32
    %5 = arith.select %4, %c1_i32, %c2_i32 : i32
    %6 = arith.remsi %arg0, %5 : i32
    %c0_i32_1 = arith.constant 0 : i32
    %7 = arith.cmpi ne, %6, %c0_i32_1 : i32
    %c0_i32_2 = arith.constant 0 : i32
    %8 = arith.cmpi slt, %6, %c0_i32_2 : i32
    %c0_i32_3 = arith.constant 0 : i32
    %9 = arith.cmpi slt, %5, %c0_i32_3 : i32
    %10 = arith.xori %8, %9 : i1
    %11 = arith.andi %10, %7 : i1
    %12 = arith.addi %6, %5 : i32
    %13 = arith.select %11, %12, %6 : i32
    %c0_i32_4 = arith.constant 0 : i32
    %14 = arith.cmpi eq, %13, %c0_i32_4 : i32
    %c0_i32_5 = arith.constant 0 : i32
    %15 = arith.cmpi eq, %arg0, %c0_i32_5 : i32
    %c0_i32_6 = arith.constant 0 : i32
    %16 = arith.cmpi eq, %arg1, %c0_i32_6 : i32
    %c0_i32_7 = arith.constant 0 : i32
    %17 = arith.cmpi eq, %arg2, %c0_i32_7 : i32
    %18 = arith.andi %16, %17 : i1
    %19 = arith.andi %15, %18 : i1
    %20 = arith.extui %19 : i1 to i32
    %c0_i32_8 = arith.constant 0 : i32
    %21 = arith.cmpi ne, %20, %c0_i32_8 : i32
    scf.if %21 {
      %c0_15 = arith.constant 0 : index
      %c0_16 = arith.constant 0 : index
      %35 = vector.load %arg4[%c0_15, %c0_16] : memref<128x128xbf16, #tpu.memory_space<vmem>>, vector<128x128xbf16>
      %c0_17 = arith.constant 0 : index
      %c0_18 = arith.constant 0 : index
      %c0_19 = arith.constant 0 : index
      %36 = vector.load %arg5[%c0_17, %c0_18, %c0_19] : memref<3x128x128xbf16, #tpu.memory_space<vmem>>, vector<1x128x128xbf16>
      %37 = vector.shape_cast %36 : vector<1x128x128xbf16> to vector<128x128xbf16>
      %cst = arith.constant dense<0.000000e+00> : vector<128x128xf32>
      %38 = tpu.matmul %35, %37, %cst {dimension_numbers = #tpu.dot_dimension_numbers<[1], [0], [0], [1], [0, 0, 1, 1], [], []>} : vector<128x128xbf16>, vector<128x128xbf16>, vector<128x128xf32> -> vector<128x128xf32>
      %39 = arith.truncf %38 : vector<128x128xf32> to vector<128x128xbf16>
      %c0_20 = arith.constant 0 : index
      %c0_21 = arith.constant 0 : index
      %40 = vector.load %arg8[%c0_20, %c0_21] : memref<128x128xbf16, #tpu.memory_space<vmem>>, vector<128x128xbf16>
      tpu.vector_store %arg8[%c0_20, %c0_21], %39 {strides = array<i32>} : memref<128x128xbf16, #tpu.memory_space<vmem>>, vector<128x128xbf16>,
    } else {
    }
    %c0_i32_9 = arith.constant 0 : i32
    %22 = arith.cmpi eq, %arg2, %c0_i32_9 : i32
    %23 = arith.extui %22 : i1 to i32
    %c0_i32_10 = arith.constant 0 : i32
    %24 = arith.cmpi ne, %23, %c0_i32_10 : i32
    scf.if %24 {
      %cst = arith.constant 0.000000e+00 : f32
      %35 = vector.broadcast %cst : f32 to vector<128x128xf32>
      %c0_15 = arith.constant 0 : index
      %c0_16 = arith.constant 0 : index
      %36 = vector.load %arg7[%c0_15, %c0_16] : memref<128x128xf32, #tpu.memory_space<vmem>>, vector<128x128xf32>
      tpu.vector_store %arg7[%c0_15, %c0_16], %35 {strides = array<i32>} : memref<128x128xf32, #tpu.memory_space<vmem>>, vector<128x128xf32>,
    } else {
    }
    %25 = arith.index_cast %1 : i32 to index
    %c0 = arith.constant 0 : index
    %26 = vector.load %arg3[%25, %c0] : memref<128x128xbf16, #tpu.memory_space<vmem>>, vector<128x128xbf16>
    %27 = arith.extui %14 : i1 to i32
    %c0_i32_11 = arith.constant 0 : i32
    %28 = arith.cmpi ne, %27, %c0_i32_11 : i32
    scf.if %28 {
      %c0_15 = arith.constant 0 : index
      %c0_16 = arith.constant 0 : index
      %35 = vector.load %arg7[%c0_15, %c0_16] : memref<128x128xf32, #tpu.memory_space<vmem>>, vector<128x128xf32>
      %36 = arith.index_cast %3 : i32 to index
      %c0_17 = arith.constant 0 : index
      %37 = vector.load %arg8[%36, %c0_17] : memref<128x128xbf16, #tpu.memory_space<vmem>>, vector<128x128xbf16>
      %cst = arith.constant dense<0.000000e+00> : vector<128x128xf32>
      %38 = tpu.matmul %26, %37, %cst {dimension_numbers = #tpu.dot_dimension_numbers<[1], [0], [0], [1], [0, 0, 1, 1], [], []>} : vector<128x128xbf16>, vector<128x128xbf16>, vector<128x128xf32> -> vector<128x128xf32>
      %39 = arith.addf %35, %38 : vector<128x128xf32>
      %c0_18 = arith.constant 0 : index
      %c0_19 = arith.constant 0 : index
      %40 = vector.load %arg7[%c0_18, %c0_19] : memref<128x128xf32, #tpu.memory_space<vmem>>, vector<128x128xf32>
      tpu.vector_store %arg7[%c0_18, %c0_19], %39 {strides = array<i32>} : memref<128x128xf32, #tpu.memory_space<vmem>>, vector<128x128xf32>,
    } else {
    }
    %true = arith.constant true
    %29 = arith.xori %14, %true : i1
    %30 = arith.extui %29 : i1 to i32
    %c0_i32_12 = arith.constant 0 : i32
    %31 = arith.cmpi ne, %30, %c0_i32_12 : i32
    scf.if %31 {
      %c0_15 = arith.constant 0 : index
      %c0_16 = arith.constant 0 : index
      %35 = vector.load %arg7[%c0_15, %c0_16] : memref<128x128xf32, #tpu.memory_space<vmem>>, vector<128x128xf32>
      %36 = arith.index_cast %3 : i32 to index
      %c0_17 = arith.constant 0 : index
      %37 = vector.load %arg9[%36, %c0_17] : memref<128x128xbf16, #tpu.memory_space<vmem>>, vector<128x128xbf16>
      %cst = arith.constant dense<0.000000e+00> : vector<128x128xf32>
      %38 = tpu.matmul %26, %37, %cst {dimension_numbers = #tpu.dot_dimension_numbers<[1], [0], [0], [1], [0, 0, 1, 1], [], []>} : vector<128x128xbf16>, vector<128x128xbf16>, vector<128x128xf32> -> vector<128x128xf32>
      %39 = arith.addf %35, %38 : vector<128x128xf32>
      %c0_18 = arith.constant 0 : index
      %c0_19 = arith.constant 0 : index
      %40 = vector.load %arg7[%c0_18, %c0_19] : memref<128x128xf32, #tpu.memory_space<vmem>>, vector<128x128xf32>
      tpu.vector_store %arg7[%c0_18, %c0_19], %39 {strides = array<i32>} : memref<128x128xf32, #tpu.memory_space<vmem>>, vector<128x128xf32>,
    } else {
    }
    %c0_i32_13 = arith.constant 0 : i32
    %32 = arith.cmpi eq, %arg2, %c0_i32_13 : i32
    %33 = arith.extui %32 : i1 to i32
    %c0_i32_14 = arith.constant 0 : i32
    %34 = arith.cmpi ne, %33, %c0_i32_14 : i32
    scf.if %34 {
      %c0_15 = arith.constant 0 : index
      %c0_16 = arith.constant 0 : index
      %35 = vector.load %arg7[%c0_15, %c0_16] : memref<128x128xf32, #tpu.memory_space<vmem>>, vector<128x128xf32>
      %c0_17 = arith.constant 0 : index
      %c0_18 = arith.constant 0 : index
      %c0_19 = arith.constant 0 : index
      %36 = vector.load %arg6[%c0_17, %c0_18, %c0_19] : memref<1x1x128xf32, #tpu.memory_space<vmem>>, vector<1x1x128xf32>
      %37 = vector.shape_cast %36 : vector<1x1x128xf32> to vector<1x128xf32>
      %38 = vector.broadcast %37 : vector<1x128xf32> to vector<128x128xf32>
      %39 = arith.addf %35, %38 : vector<128x128xf32>
      %c2_i32_20 = arith.constant 2 : i32
      %40 = arith.cmpi slt, %arg0, %c2_i32_20 : i32
      %41 = arith.extui %40 : i1 to i32
      %c0_i32_21 = arith.constant 0 : i32
      %42 = arith.cmpi ne, %41, %c0_i32_21 : i32
      scf.if %42 {
        %cst = arith.constant 0.000000e+00 : f32
        %46 = vector.broadcast %cst : f32 to vector<128x128xf32>
        %47 = arith.maximumf %39, %46 : vector<128x128xf32>
        %48 = arith.truncf %47 : vector<128x128xf32> to vector<128x128xbf16>
        %c1_i32_24 = arith.constant 1 : i32
        %49 = arith.addi %arg0, %c1_i32_24 : i32
        %50 = arith.index_cast %49 : i32 to index
        %c0_25 = arith.constant 0 : index
        %c0_26 = arith.constant 0 : index
        %51 = vector.load %arg5[%50, %c0_25, %c0_26] : memref<3x128x128xbf16, #tpu.memory_space<vmem>>, vector<1x128x128xbf16>
        %52 = vector.shape_cast %51 : vector<1x128x128xbf16> to vector<128x128xbf16>
        %cst_27 = arith.constant dense<0.000000e+00> : vector<128x128xf32>
        %53 = tpu.matmul %48, %52, %cst_27 {dimension_numbers = #tpu.dot_dimension_numbers<[1], [0], [0], [1], [0, 0, 1, 1], [], []>} : vector<128x128xbf16>, vector<128x128xbf16>, vector<128x128xf32> -> vector<128x128xf32>
        %54 = arith.truncf %53 : vector<128x128xf32> to vector<128x128xbf16>
        %55 = arith.extui %14 : i1 to i32
        %c0_i32_28 = arith.constant 0 : i32
        %56 = arith.cmpi ne, %55, %c0_i32_28 : i32
        scf.if %56 {
          %60 = arith.index_cast %1 : i32 to index
          %c0_31 = arith.constant 0 : index
          %61 = vector.load %arg9[%60, %c0_31] : memref<128x128xbf16, #tpu.memory_space<vmem>>, vector<128x128xbf16>
          tpu.vector_store %arg9[%60, %c0_31], %54 {strides = array<i32>} : memref<128x128xbf16, #tpu.memory_space<vmem>>, vector<128x128xbf16>,
        } else {
        }
        %true_29 = arith.constant true
        %57 = arith.xori %14, %true_29 : i1
        %58 = arith.extui %57 : i1 to i32
        %c0_i32_30 = arith.constant 0 : i32
        %59 = arith.cmpi ne, %58, %c0_i32_30 : i32
        scf.if %59 {
          %60 = arith.index_cast %1 : i32 to index
          %c0_31 = arith.constant 0 : index
          %61 = vector.load %arg8[%60, %c0_31] : memref<128x128xbf16, #tpu.memory_space<vmem>>, vector<128x128xbf16>
          tpu.vector_store %arg8[%60, %c0_31], %54 {strides = array<i32>} : memref<128x128xbf16, #tpu.memory_space<vmem>>, vector<128x128xbf16>,
        } else {
        }
      } else {
      }
      %c2_i32_22 = arith.constant 2 : i32
      %43 = arith.cmpi eq, %arg0, %c2_i32_22 : i32
      %44 = arith.extui %43 : i1 to i32
      %c0_i32_23 = arith.constant 0 : i32
      %45 = arith.cmpi ne, %44, %c0_i32_23 : i32
      scf.if %45 {
        %46 = tpu.iota {dimensions = array<i32: 1>} : vector<128x128xi32>
        %c8_i32 = arith.constant 8 : i32
        %47 = vector.broadcast %c8_i32 : i32 to vector<128x128xi32>
        %48 = arith.cmpi slt, %46, %47 : vector<128x128xi32>
        %cst = arith.constant -1.000000e+30 : f32
        %49 = vector.broadcast %cst : f32 to vector<128x128xf32>
        %50 = arith.select %48, %39, %49 : vector<128x128xi1>, vector<128x128xf32>
        %cst_24 = arith.constant dense<0xFF800000> : vector<128xf32>
        %51 = vector.multi_reduction <maximumf>, %50, %cst_24 [1] : vector<128x128xf32> to vector<128xf32>
        %52 = vector.shape_cast %51 : vector<128xf32> to vector<128x1xf32>
        %53 = vector.broadcast %52 : vector<128x1xf32> to vector<128x128xf32>
        %54 = arith.subf %50, %53 : vector<128x128xf32>
        %55 = math.exp %54 : vector<128x128xf32>
        %cst_25 = arith.constant dense<0.000000e+00> : vector<128xf32>
        %56 = vector.multi_reduction <add>, %55, %cst_25 [1] : vector<128x128xf32> to vector<128xf32>
        %57 = vector.shape_cast %56 : vector<128xf32> to vector<128x1xf32>
        %58 = math.log %57 : vector<128x1xf32>
        %59 = vector.broadcast %58 : vector<128x1xf32> to vector<128x128xf32>
        %60 = arith.subf %54, %59 : vector<128x128xf32>
        %c0_26 = arith.constant 0 : index
        %c0_27 = arith.constant 0 : index
        %61 = vector.load %arg7[%c0_26, %c0_27] : memref<128x128xf32, #tpu.memory_space<vmem>>, vector<128x128xf32>
        tpu.vector_store %arg7[%c0_26, %c0_27], %60 {strides = array<i32>} : memref<128x128xf32, #tpu.memory_space<vmem>>, vector<128x128xf32>,
      } else {
      }
    } else {
    }
    return
  }
  func.func @transform_0(%arg0: i32, %arg1: i32, %arg2: i32) -> (i32, i32) {
    %c0_i32 = arith.constant 0 : i32
    %c0_i32_0 = arith.constant 0 : i32
    %c0_i32_1 = arith.constant 0 : i32
    return %c0_i32, %c0_i32_0 : i32, i32
  }
  func.func @transform_1(%arg0: i32, %arg1: i32, %arg2: i32) -> (i32, i32) {
    %c0_i32 = arith.constant 0 : i32
    %c0_i32_0 = arith.constant 0 : i32
    %c0_i32_1 = arith.constant 0 : i32
    return %c0_i32, %c0_i32_0 : i32, i32
  }
  func.func @transform_2(%arg0: i32, %arg1: i32, %arg2: i32) -> (i32, i32, i32) {
    %c0_i32 = arith.constant 0 : i32
    %c0_i32_0 = arith.constant 0 : i32
    %c0_i32_1 = arith.constant 0 : i32
    %c0_i32_2 = arith.constant 0 : i32
    return %c0_i32, %c0_i32_0, %c0_i32_1 : i32, i32, i32
  }
  func.func @transform_3(%arg0: i32, %arg1: i32, %arg2: i32) -> (i32, i32, i32) {
    %c0_i32 = arith.constant 0 : i32
    %c0_i32_0 = arith.constant 0 : i32
    %c0_i32_1 = arith.constant 0 : i32
    return %arg0, %c0_i32, %c0_i32_0 : i32, i32, i32
  }
  func.func @transform_4(%arg0: i32, %arg1: i32, %arg2: i32) -> (i32, i32) {
    %c0_i32 = arith.constant 0 : i32
    %c0_i32_0 = arith.constant 0 : i32
    return %arg1, %c0_i32 : i32, i32
  }
}

</mosaic_0001>

<llo_original>
// kernel: pyg_net_forward.1
$region0: #{pyg_net_forward.1}
  #allocation0 [shape = 'u32[]', space=smem, size = 0x4, offset = 0x4, fixed_abs, tag = 'smem constant byte address 0x4 - core index']
  #allocation1 [shape = 'u32[144,128]{1,0:T(1,128)}', space=vmem, size = 0x12000, scoped, tag = 'internal scratch']
  #allocation2 [shape = 'bf16[128,128]{1,0:T(16,128)(2,1)}', space=vmem, size = 0x8000, scoped, tag = 'scratch operand']
  #allocation3 [shape = 'bf16[128,128]{1,0:T(16,128)(2,1)}', space=vmem, size = 0x8000, scoped, tag = 'scratch operand']
  %s0 = inlined_call_operand.vmem [shape: bf16[128,128], index: 0, kind: input, shape index: {}]
  %s1 = inlined_call_operand.vmem [shape: bf16[128,128], index: 1, kind: input, shape index: {}]
  %s2 = inlined_call_operand.vmem [shape: bf16[3,128,128], index: 2, kind: input, shape index: {}]
  %s3 = inlined_call_operand.vmem [shape: f32[3,1,128], index: 3, kind: input, shape index: {}]
  %s4 = inlined_call_operand.vmem [shape: f32[128,128], index: 4, kind: output, shape index: {}]
  %s5 = sld [smem:[#allocation0]]
  $region85: #{pyg_net_forward.1} parent=0
    _
  %s7 = ssub.s32 1, %s5
  %s8 = scalar_select 0, %s7, %s5
  loop: start=0, step=1, limit=5
  $region2: #{pyg_net_forward.1} parent=0 // loop_pre_header
    _
  $region3: #{pyg_net_forward.1} parent=0 // loop_header
    %s10 = sphi 0, %s14
    %p11 = scmp.ge.s32.totalorder %s10, 5
    %s17 = sphi 0, %s36
    %s18 = sphi 0, %s32
    %s19 = sphi 0, %s28
    %s20 = sphi 0, %s17
    %s21 = sphi 0, %s18
    %s22 = sphi 0, %s19
    %s23 = sphi 0, %s20
    %s24 = sphi 0, %s21
    %s25 = sphi 0, %s22
    %s37 = sphi 0, %s37
    %s39 = sphi 0, %s37
    %s40 = sphi 0, %s39
    %s54 = sphi 0, %s40
    %s58 = sphi 0, %s58
    %s60 = sphi 0, %s58
    %s61 = sphi 0, %s60
    %s75 = sphi 0, %s61
    %s79 = sphi 0, %s79
    %s81 = sphi 0, %s79
    %s82 = sphi 0, %s81
    %s96 = sphi 0, %s82
    %s102 = sphi 0, %s104
    %s105 = sphi 0, %s102
    %s106 = sphi 0, %s105
    %s122 = sphi 0, %s106
    %s128 = sphi 0, %s130
    %s131 = sphi 0, %s128
    %s132 = sphi 0, %s131
    %s148 = sphi 0, %s132
  $region4: #{pyg_net_forward.1} parent=0 // loop_header_branch
    %13 = sbr.rel (%p11) target = $region8
  $region5: #{pyg_net_forward.1} parent=0 // loop_body
    %s15 = ssub.s32 %s10, 1
    %s16 = ssub.s32 %s10, 2
    %s26 = sadd.s32 1, %s19
    %p27 = scmp.ge.s32.totalorder %s26, 1
    %s28 = scalar_select %p27, 0, %s26
    %s29 = sadd.s32 1, %s18
    %s30 = scalar_select %p27, %s29, %s18
    %p31 = scmp.ge.s32.totalorder %s30, 1
    %s32 = scalar_select %p31, 0, %s30
    %s33 = sadd.s32 1, %s17
    %s34 = scalar_select %p31, %s33, %s17
    %p35 = scmp.ge.s32.totalorder %s34, 3
    %s36 = scalar_select %p35, 0, %s34
    %s38 = sadd.s32 %s37, 1
    %p41 = scmp.eq.s32.totalorder %s10, 2
    %p42 = scmp.ne.s32.totalorder %s37, %s39
    %p43 = scmp.eq.s32.totalorder %s10, 0
    %p44 = por %p42, %p43
    %p45 = scmp.ne.s32.totalorder %s37, %s39
    %p46 = scmp.eq.s32.totalorder %s15, 2
    %p47 = por %p45, %p46
    %p48 = scmp.ne.s32.totalorder %s39, %s40
    %p49 = scmp.eq.s32.totalorder %s15, 0
    %p50 = por %p48, %p49
    %p51 = scmp.ne.s32.totalorder %s39, %s40
    %p52 = scmp.eq.s32.totalorder %s16, 2
    %p53 = por %p51, %p52
    %p55 = scmp.ne.s32.totalorder %s40, %s54
    %p56 = scmp.eq.s32.totalorder %s16, 0
    %p57 = por %p55, %p56
    %s59 = sadd.s32 %s58, 1
    %p62 = scmp.eq.s32.totalorder %s10, 2
    %p63 = scmp.ne.s32.totalorder %s58, %s60
    %p64 = scmp.eq.s32.totalorder %s10, 0
    %p65 = por %p63, %p64
    %p66 = scmp.ne.s32.totalorder %s58, %s60
    %p67 = scmp.eq.s32.totalorder %s15, 2
    %p68 = por %p66, %p67
    %p69 = scmp.ne.s32.totalorder %s60, %s61
    %p70 = scmp.eq.s32.totalorder %s15, 0
    %p71 = por %p69, %p70
    %p72 = scmp.ne.s32.totalorder %s60, %s61
    %p73 = scmp.eq.s32.totalorder %s16, 2
    %p74 = por %p72, %p73
    %p76 = scmp.ne.s32.totalorder %s61, %s75
    %p77 = scmp.eq.s32.totalorder %s16, 0
    %p78 = por %p76, %p77
    %s80 = sadd.s32 %s79, 1
    %p83 = scmp.eq.s32.totalorder %s10, 2
    %p84 = scmp.ne.s32.totalorder %s79, %s81
    %p85 = scmp.eq.s32.totalorder %s10, 0
    %p86 = por %p84, %p85
    %p87 = scmp.ne.s32.totalorder %s79, %s81
    %p88 = scmp.eq.s32.totalorder %s15, 2
    %p89 = por %p87, %p88
    %p90 = scmp.ne.s32.totalorder %s81, %s82
    %p91 = scmp.eq.s32.totalorder %s15, 0
    %p92 = por %p90, %p91
    %p93 = scmp.ne.s32.totalorder %s81, %s82
    %p94 = scmp.eq.s32.totalorder %s16, 2
    %p95 = por %p93, %p94
    %p97 = scmp.ne.s32.totalorder %s82, %s96
    %p98 = scmp.eq.s32.totalorder %s16, 0
    %p99 = por %p97, %p98
    %s100 = ssub.s32 %s17, %s36
    %p101 = scmp.eq.s32.totalorder %s100, 0
    %s103 = sadd.s32 %s102, 1
    %s104 = scalar_select %p101, %s102, %s103
    %p107 = pneg %p101
    %p108 = scmp.eq.s32.totalorder %s10, 2
    %p109 = por %p107, %p108
    %p110 = scmp.ne.s32.totalorder %s102, %s105
    %p111 = scmp.eq.s32.totalorder %s10, 0
    %p112 = por %p110, %p111
    %p113 = scmp.ne.s32.totalorder %s102, %s105
    %p114 = scmp.eq.s32.totalorder %s15, 2
    %p115 = por %p113, %p114
    %p116 = scmp.ne.s32.totalorder %s105, %s106
    %p117 = scmp.eq.s32.totalorder %s15, 0
    %p118 = por %p116, %p117
    %p119 = scmp.ne.s32.totalorder %s105, %s106
    %p120 = scmp.eq.s32.totalorder %s16, 2
    %p121 = por %p119, %p120
    %p123 = scmp.ne.s32.totalorder %s106, %s122
    %p124 = scmp.eq.s32.totalorder %s16, 0
    %p125 = por %p123, %p124
    %s126 = ssub.s32 %s18, %s32
    %p127 = scmp.eq.s32.totalorder %s126, 0
    %s129 = sadd.s32 %s128, 1
    %s130 = scalar_select %p127, %s128, %s129
    %p133 = pneg %p127
    %p134 = scmp.eq.s32.totalorder %s10, 2
    %p135 = por %p133, %p134
    %p136 = scmp.ne.s32.totalorder %s128, %s131
    %p137 = scmp.eq.s32.totalorder %s10, 0
    %p138 = por %p136, %p137
    %p139 = scmp.ne.s32.totalorder %s128, %s131
    %p140 = scmp.eq.s32.totalorder %s15, 2
    %p141 = por %p139, %p140
    %p142 = scmp.ne.s32.totalorder %s131, %s132
    %p143 = scmp.eq.s32.totalorder %s15, 0
    %p144 = por %p142, %p143
    %p145 = scmp.ne.s32.totalorder %s131, %s132
    %p146 = scmp.eq.s32.totalorder %s16, 2
    %p147 = por %p145, %p146
    %p149 = scmp.ne.s32.totalorder %s132, %s148
    %p150 = scmp.eq.s32.totalorder %s16, 0
    %p151 = por %p149, %p150
    %p152 = scmp.le.s32.totalorder 1, %s10
    %p153 = scmp.lt.s32.totalorder %s10, 4
    %p154 = pnand %p152, %p153
    %p155 = pneg %p154
    // Predicated region
    $region9: #{pyg_net_forward.1} parent=5 // pred_check
      _
    $region10: #{pyg_net_forward.1} parent=5 // pred_check_branch
      %157 = sbr.rel (%p154) target = $region12
    $region11: #{pyg_net_forward.1} parent=5 // pred_region
      %s158 = ssub.s32 %s10, 1
      // Predicated region
      $region13: #{pyg_net_forward.1} parent=11 // pred_check
        %p159 = pneg %p50
      $region14: #{pyg_net_forward.1} parent=11 // pred_check_branch
        %161 = sbr.rel (%p159) target = $region16
      $region15: #{pyg_net_forward.1} parent=11 // pred_region
        _
      $region16: #{pyg_net_forward.1} parent=11 // pred_fallthru
        _
      // Predicated region
      $region17: #{pyg_net_forward.1} parent=11 // pred_check
        %p162 = pneg %p71
      $region18: #{pyg_net_forward.1} parent=11 // pred_check_branch
        %164 = sbr.rel (%p162) target = $region20
      $region19: #{pyg_net_forward.1} parent=11 // pred_region
        _
      $region20: #{pyg_net_forward.1} parent=11 // pred_fallthru
        _
      // Predicated region
      $region21: #{pyg_net_forward.1} parent=11 // pred_check
        %p165 = pneg %p92
      $region22: #{pyg_net_forward.1} parent=11 // pred_check_branch
        %167 = sbr.rel (%p165) target = $region24
      $region23: #{pyg_net_forward.1} parent=11 // pred_region
        _
      $region24: #{pyg_net_forward.1} parent=11 // pred_fallthru
        _
    $region12: #{pyg_net_forward.1} parent=5 // pred_fallthru
      _
    %p168 = scmp.lt.s32.totalorder %s10, 3
    // Predicated region
    $region25: #{pyg_net_forward.1} parent=5 // pred_check
      %p169 = pneg %p168
    $region26: #{pyg_net_forward.1} parent=5 // pred_check_branch
      %171 = sbr.rel (%p169) target = $region28
    $region27: #{pyg_net_forward.1} parent=5 // pred_region
      // Predicated region
      $region29: #{pyg_net_forward.1} parent=27 // pred_check
        %p172 = pneg %p112
      $region30: #{pyg_net_forward.1} parent=27 // pred_check_branch
        %174 = sbr.rel (%p172) target = $region32
      $region31: #{pyg_net_forward.1} parent=27 // pred_region
        %p175 = scmp.lt.s32.totalorder %s17, 2
        %s176 = scalar_select %p175, %s17, 2
        %s177 = scalar_lea.vmem %s3, %s176
      $region32: #{pyg_net_forward.1} parent=27 // pred_fallthru
        _
    $region28: #{pyg_net_forward.1} parent=5 // pred_fallthru
      _
    %p178 = scmp.le.s32.totalorder 1, %s10
    %p179 = scmp.lt.s32.totalorder %s10, 4
    %p180 = pnand %p178, %p179
    %p181 = pneg %p180
    // Predicated region
    $region33: #{pyg_net_forward.1} parent=5 // pred_check
      _
    $region34: #{pyg_net_forward.1} parent=5 // pred_check_branch
      %183 = sbr.rel (%p180) target = $region36
    $region35: #{pyg_net_forward.1} parent=5 // pred_region
      %s184 = ssub.s32 %s10, 1
      %p185 = pneg %p50
      %p186 = pneg %p47
      %p187 = pneg %p71
      %p188 = pneg %p68
      %p189 = pneg %p92
      %p190 = pneg %p89
      %p191 = scmp.lt.s32.totalorder %s20, 2
      %s192 = scalar_select %p191, %s20, 2
      %s193 = scalar_lea.vmem %s3, %s192
      %p194 = pneg %p118
      %p195 = pneg %p115
      %p196 = pneg %p144
      %p197 = pneg %p141
      %s198 = smul.u32 16, %s21
      %p199 = scmp.lt.s32.totalorder %s198, 15
      %s200 = scalar_select %p199, %s198, 15
      %s201 = smul.addr %s200, 8
      %s202 = scalar_lea.vmem %s4, %s201
      %p203 = scmp.lt.s32.totalorder %s20, 2
      %s204 = scalar_select %p203, %s20, 2
      %s205 = scalar_lea.vmem %s3, %s204
      %s206 = smul.u32 16, %s21
      %p207 = scmp.lt.s32.totalorder %s206, 15
      %s208 = scalar_select %p207, %s206, 15
      %s209 = smul.addr %s208, 8
      %s210 = scalar_lea.vmem %s4, %s209
      %s211 = smul.u32 16, %s21
      %s213 = smul.u32 %s21, 128
      %s214 = smul.u32 %s22, 128
      %p215 = scmp.lt.s32.totalorder %s20, 0
      %s216 = ssub.s32 0, %s20
      %s217 = scalar_select %p215, %s216, %s20
      %s218 = sand.u32 %s217, 1
      %s219 = ssub.s32 0, %s218
      %s220 = scalar_select %p215, %s219, %s218
      %p221 = scmp.ne.s32.totalorder %s220, 0
      %p222 = scmp.lt.s32.totalorder %s220, 0
      %p223 = pnand %p222, %p221
      %p224 = pneg %p223
      %s225 = sadd.s32 %s220, 2
      %s226 = scalar_select %p224, %s225, %s220
      %p227 = scmp.eq.s32.totalorder %s226, 0
      %p228 = scmp.eq.s32.totalorder %s20, 0
      %p229 = scmp.eq.s32.totalorder %s21, 0
      %p230 = scmp.eq.s32.totalorder %s22, 0
      %p231 = pnand %p229, %p230
      %p232 = pneg %p231
      %p233 = pnand %p228, %p232
      %p234 = pneg %p233
      // Predicated region
      $region37: #{pyg_net_forward.1} parent=35 // pred_check
        _
      $region38: #{pyg_net_forward.1} parent=35 // pred_check_branch
        %236 = sbr.rel (%p233) target = $region40
      $region39: #{pyg_net_forward.1} parent=35 // pred_region
        %v237 = vld [vmem:[%s1] sm:$0xf]
        %v238 = vld [vmem:[%s1 + $0x4] sm:$0xf]
        %v239 = vld [vmem:[%s1 + $0x8] sm:$0xf]
        %v240 = vld [vmem:[%s1 + $0xc] sm:$0xf]
        %v241 = vld [vmem:[%s1 + $0x10] sm:$0xf]
        %v242 = vld [vmem:[%s1 + $0x14] sm:$0xf]
        %v243 = vld [vmem:[%s1 + $0x18] sm:$0xf]
        %v244 = vld [vmem:[%s1 + $0x1c] sm:$0xf]
        %v245 = vld [vmem:[%s1 + $0x20] sm:$0xf]
        %v246 = vld [vmem:[%s1 + $0x24] sm:$0xf]
        %v247 = vld [vmem:[%s1 + $0x28] sm:$0xf]
        %v248 = vld [vmem:[%s1 + $0x2c] sm:$0xf]
        %v249 = vld [vmem:[%s1 + $0x30] sm:$0xf]
        %v250 = vld [vmem:[%s1 + $0x34] sm:$0xf]
        %v251 = vld [vmem:[%s1 + $0x38] sm:$0xf]
        %v252 = vld [vmem:[%s1 + $0x3c] sm:$0xf]
        %v253 = vld [vmem:[%s2] sm:$0xf]
        %v254 = vld [vmem:[%s2 + $0x4] sm:$0xf]
        %v255 = vld [vmem:[%s2 + $0x8] sm:$0xf]
        %v256 = vld [vmem:[%s2 + $0xc] sm:$0xf]
        %v257 = vld [vmem:[%s2 + $0x10] sm:$0xf]
        %v258 = vld [vmem:[%s2 + $0x14] sm:$0xf]
        %v259 = vld [vmem:[%s2 + $0x18] sm:$0xf]
        %v260 = vld [vmem:[%s2 + $0x1c] sm:$0xf]
        %v261 = vld [vmem:[%s2 + $0x20] sm:$0xf]
        %v262 = vld [vmem:[%s2 + $0x24] sm:$0xf]
        %v263 = vld [vmem:[%s2 + $0x28] sm:$0xf]
        %v264 = vld [vmem:[%s2 + $0x2c] sm:$0xf]
        %v265 = vld [vmem:[%s2 + $0x30] sm:$0xf]
        %v266 = vld [vmem:[%s2 + $0x34] sm:$0xf]
        %v267 = vld [vmem:[%s2 + $0x38] sm:$0xf]
        %v268 = vld [vmem:[%s2 + $0x3c] sm:$0xf]
        %v285 = vunpack.c.l.b16 %v237
        %v286 = vunpack.c.l.b16 %v238
        %v287 = vunpack.c.l.b16 %v239
        %v288 = vunpack.c.l.b16 %v240
        %v289 = vunpack.c.l.b16 %v241
        %v290 = vunpack.c.l.b16 %v242
        %v291 = vunpack.c.l.b16 %v243
        %v292 = vunpack.c.l.b16 %v244
        %v293 = vunpack.c.l.b16 %v245
        %v294 = vunpack.c.l.b16 %v246
        %v295 = vunpack.c.l.b16 %v247
        %v296 = vunpack.c.l.b16 %v248
        %v297 = vunpack.c.l.b16 %v249
        %v298 = vunpack.c.l.b16 %v250
        %v299 = vunpack.c.l.b16 %v251
        %v300 = vunpack.c.l.b16 %v252
        %v301 = vpack.c.b16 %v286, %v285
        %v302 = vpack.c.b16 %v288, %v287
        %v303 = vpack.c.b16 %v290, %v289
        %v304 = vpack.c.b16 %v292, %v291
        %v305 = vpack.c.b16 %v294, %v293
        %v306 = vpack.c.b16 %v296, %v295
        %v307 = vpack.c.b16 %v298, %v297
        %v308 = vpack.c.b16 %v300, %v299
        %v333 = vunpack.c.l.b16 %v253
        %v334 = vunpack.c.l.b16 %v254
        %v335 = vunpack.c.l.b16 %v255
        %v336 = vunpack.c.l.b16 %v256
        %v337 = vunpack.c.l.b16 %v257
        %v338 = vunpack.c.l.b16 %v258
        %v339 = vunpack.c.l.b16 %v259
        %v340 = vunpack.c.l.b16 %v260
        %v341 = vunpack.c.l.b16 %v261
        %v342 = vunpack.c.l.b16 %v262
        %v343 = vunpack.c.l.b16 %v263
        %v344 = vunpack.c.l.b16 %v264
        %v345 = vunpack.c.l.b16 %v265
        %v346 = vunpack.c.l.b16 %v266
        %v347 = vunpack.c.l.b16 %v267
        %v348 = vunpack.c.l.b16 %v268
        %v349 = vpack.c.b16 %v334, %v333
        %v350 = vpack.c.b16 %v336, %v335
        %v351 = vpack.c.b16 %v338, %v337
        %v352 = vpack.c.b16 %v340, %v339
        %v353 = vpack.c.b16 %v342, %v341
        %v354 = vpack.c.b16 %v344, %v343
        %v355 = vpack.c.b16 %v346, %v345
        %v356 = vpack.c.b16 %v348, %v347
        %365 = vmatprep.subr.bf16.mxu0 0
        %366 = vmatpush1.bf16.msra.mxu0 %v349
        %367 = vmatprep.subr.bf16.mxu0 0
        %368 = vmatpush1.bf16.msra.mxu0 %v350
        %369 = vmatprep.subr.bf16.mxu0 0
        %370 = vmatpush1.bf16.msra.mxu0 %v351
        %371 = vmatprep.subr.bf16.mxu0 0
        %372 = vmatpush1.bf16.msra.mxu0 %v352
        %373 = vmatprep.subr.bf16.mxu0 0
        %374 = vmatpush1.bf16.msra.mxu0 %v353
        %375 = vmatprep.subr.bf16.mxu0 0
        %376 = vmatpush1.bf16.msra.mxu0 %v354
        %377 = vmatprep.subr.bf16.mxu0 0
        %378 = vmatpush1.bf16.msra.mxu0 %v355
        %379 = vmatprep.subr.bf16.mxu0 0
        %380 = vmatpush1.bf16.msra.mxu0 %v356
        %381 = vmatprep.subr.bf16.mxu0 0
        %382 = vmatpush1.bf16.msra.mxu0 0
        %383 = vmatprep.subr.bf16.mxu0 0
        %384 = vmatpush1.bf16.msra.mxu0 0
        %385 = vmatprep.subr.bf16.mxu0 0
        %386 = vmatpush1.bf16.msra.mxu0 0
        %387 = vmatprep.subr.bf16.mxu0 0
        %388 = vmatpush1.bf16.msra.mxu0 0
        %389 = vmatprep.subr.bf16.mxu0 0
        %390 = vmatpush1.bf16.msra.mxu0 0
        %391 = vmatprep.subr.bf16.mxu0 0
        %392 = vmatpush1.bf16.msra.mxu0 0
        %393 = vmatprep.subr.bf16.mxu0 0
        %394 = vmatpush1.bf16.msra.mxu0 0
        %395 = vmatprep.subr.bf16.mxu0 0
        %396 = vmatpush1.bf16.msra.mxu0 0
        %397 = vmatprep.mubr.bf16.mxu0 0
        %398 = vmatmul.mubr.bf16.gmra.mrb[0].mxu0 %v301
        %v399 = vpop.f32.mrb[0].mxu0
        %v400 = vadd.f32 0.0, %v399
        %v401 = vpop.f32.mrb[0].mxu0
        %v402 = vpop.f32.mrb[0].mxu0
        %v403 = vadd.f32 0.0, %v402
        %v404 = vpop.f32.mrb[0].mxu0
        %405 = vmatprep.mubr.bf16.mxu0 0
        %406 = vmatmul.mubr.bf16.gmra.mrb[0].mxu0 %v302
        %v407 = vpop.f32.mrb[0].mxu0
        %v408 = vadd.f32 0.0, %v407
        %v409 = vpop.f32.mrb[0].mxu0
        %v410 = vpop.f32.mrb[0].mxu0
        %v411 = vadd.f32 0.0, %v410
        %v412 = vpop.f32.mrb[0].mxu0
        %413 = vmatprep.mubr.bf16.mxu0 0
        %414 = vmatmul.mubr.bf16.gmra.mrb[0].mxu0 %v303
        %v415 = vpop.f32.mrb[0].mxu0
        %v416 = vadd.f32 0.0, %v415
        %v417 = vpop.f32.mrb[0].mxu0
        %v418 = vpop.f32.mrb[0].mxu0
        %v419 = vadd.f32 0.0, %v418
        %v420 = vpop.f32.mrb[0].mxu0
        %421 = vmatprep.mubr.bf16.mxu0 0
        %422 = vmatmul.mubr.bf16.gmra.mrb[0].mxu0 %v304
        %v423 = vpop.f32.mrb[0].mxu0
        %v424 = vadd.f32 0.0, %v423
        %v425 = vpop.f32.mrb[0].mxu0
        %v426 = vpop.f32.mrb[0].mxu0
        %v427 = vadd.f32 0.0, %v426
        %v428 = vpop.f32.mrb[0].mxu0
        %429 = vmatprep.mubr.bf16.mxu0 0
        %430 = vmatmul.mubr.bf16.gmra.mrb[0].mxu0 %v305
        %v431 = vpop.f32.mrb[0].mxu0
        %v432 = vadd.f32 0.0, %v431
        %v433 = vpop.f32.mrb[0].mxu0
        %v434 = vpop.f32.mrb[0].mxu0
        %v435 = vadd.f32 0.0, %v434
        %v436 = vpop.f32.mrb[0].mxu0
        %437 = vmatprep.mubr.bf16.mxu0 0
        %438 = vmatmul.mubr.bf16.gmra.mrb[0].mxu0 %v306
        %v439 = vpop.f32.mrb[0].mxu0
        %v440 = vadd.f32 0.0, %v439
        %v441 = vpop.f32.mrb[0].mxu0
        %v442 = vpop.f32.mrb[0].mxu0
        %v443 = vadd.f32 0.0, %v442
        %v444 = vpop.f32.mrb[0].mxu0
        %445 = vmatprep.mubr.bf16.mxu0 0
        %446 = vmatmul.mubr.bf16.gmra.mrb[0].mxu0 %v307
        %v447 = vpop.f32.mrb[0].mxu0
        %v448 = vadd.f32 0.0, %v447
        %v449 = vpop.f32.mrb[0].mxu0
        %v450 = vpop.f32.mrb[0].mxu0
        %v451 = vadd.f32 0.0, %v450
        %v452 = vpop.f32.mrb[0].mxu0
        %453 = vmatprep.mubr.bf16.mxu0 0
        %454 = vmatmul.mubr.bf16.gmra.mrb[0].mxu0 %v308
        %v455 = vpop.f32.mrb[0].mxu0
        %v456 = vadd.f32 0.0, %v455
        %v457 = vpop.f32.mrb[0].mxu0
        %v458 = vpop.f32.mrb[0].mxu0
        %v459 = vadd.f32 0.0, %v458
        %v460 = vpop.f32.mrb[0].mxu0
        %461 = vdwg.mxu0
        %v462 = vpack.c.bf16 %v403, %v400
        %v463 = vpack.c.bf16 %v411, %v408
        %v464 = vpack.c.bf16 %v419, %v416
        %v465 = vpack.c.bf16 %v427, %v424
        %v466 = vpack.c.bf16 %v435, %v432
        %v467 = vpack.c.bf16 %v443, %v440
        %v468 = vpack.c.bf16 %v451, %v448
        %v469 = vpack.c.bf16 %v459, %v456
        %470 = vst [vmem:[#allocation2] sm:$0xff] %v462
        %471 = vst [vmem:[#allocation2 + $0x8] sm:$0xff] %v463
        %472 = vst [vmem:[#allocation2 + $0x10] sm:$0xff] %v464
        %473 = vst [vmem:[#allocation2 + $0x18] sm:$0xff] %v465
        %474 = vst [vmem:[#allocation2 + $0x20] sm:$0xff] %v466
        %475 = vst [vmem:[#allocation2 + $0x28] sm:$0xff] %v467
        %476 = vst [vmem:[#allocation2 + $0x30] sm:$0xff] %v468
        %477 = vst [vmem:[#allocation2 + $0x38] sm:$0xff] %v469
      $region40: #{pyg_net_forward.1} parent=35 // pred_fallthru
        _
      // Predicated region
      $region41: #{pyg_net_forward.1} parent=35 // pred_check
        %p478 = pneg %p230
      $region42: #{pyg_net_forward.1} parent=35 // pred_check_branch
        %480 = sbr.rel (%p478) target = $region44
      $region43: #{pyg_net_forward.1} parent=35 // pred_region
        %481 = vst [vmem:[%s210] sm:$0xff] 0.0
        %482 = vst [vmem:[%s210 + $0x8] sm:$0xff] 0.0
        %483 = vst [vmem:[%s210 + $0x10] sm:$0xff] 0.0
        %484 = vst [vmem:[%s210 + $0x18] sm:$0xff] 0.0
        %485 = vst [vmem:[%s210 + $0x20] sm:$0xff] 0.0
        %486 = vst [vmem:[%s210 + $0x28] sm:$0xff] 0.0
        %487 = vst [vmem:[%s210 + $0x30] sm:$0xff] 0.0
        %488 = vst [vmem:[%s210 + $0x38] sm:$0xff] 0.0
        %489 = vst [vmem:[%s210 + $0x40] sm:$0xff] 0.0
        %490 = vst [vmem:[%s210 + $0x48] sm:$0xff] 0.0
        %491 = vst [vmem:[%s210 + $0x50] sm:$0xff] 0.0
        %492 = vst [vmem:[%s210 + $0x58] sm:$0xff] 0.0
        %493 = vst [vmem:[%s210 + $0x60] sm:$0xff] 0.0
        %494 = vst [vmem:[%s210 + $0x68] sm:$0xff] 0.0
        %495 = vst [vmem:[%s210 + $0x70] sm:$0xff] 0.0
        %496 = vst [vmem:[%s210 + $0x78] sm:$0xff] 0.0
      $region44: #{pyg_net_forward.1} parent=35 // pred_fallthru
        _
      %s497 = sshra.s32 %s213, 3
      %s498 = sand.u32 %s213, 7
      %s499 = smul.addr %s497, 4
      %s500 = scalar_lea.vmem %s0, %s499
      %v501 = vld [vmem:[%s500] sm:$0xf]
      %v502 = vld [vmem:[%s500 + $0x4] sm:$0xf]
      %v503 = vld [vmem:[%s500 + $0x8] sm:$0xf]
      %v504 = vld [vmem:[%s500 + $0xc] sm:$0xf]
      %v505 = vld [vmem:[%s500 + $0x10] sm:$0xf]
      %v506 = vld [vmem:[%s500 + $0x14] sm:$0xf]
      %v507 = vld [vmem:[%s500 + $0x18] sm:$0xf]
      %v508 = vld [vmem:[%s500 + $0x1c] sm:$0xf]
      %v509 = vld [vmem:[%s500 + $0x20] sm:$0xf]
      %v510 = vld [vmem:[%s500 + $0x24] sm:$0xf]
      %v511 = vld [vmem:[%s500 + $0x28] sm:$0xf]
      %v512 = vld [vmem:[%s500 + $0x2c] sm:$0xf]
      %v513 = vld [vmem:[%s500 + $0x30] sm:$0xf]
      %v514 = vld [vmem:[%s500 + $0x34] sm:$0xf]
      %v515 = vld [vmem:[%s500 + $0x38] sm:$0xf]
      %v516 = vld [vmem:[%s500 + $0x3c] sm:$0xf]
      // Predicated region
      $region45: #{pyg_net_forward.1} parent=35 // pred_check
        %p517 = pneg %p227
      $region46: #{pyg_net_forward.1} parent=35 // pred_check_branch
        %519 = sbr.rel (%p517) target = $region48
      $region47: #{pyg_net_forward.1} parent=35 // pred_region
        %v520 = vld [vmem:[%s210] sm:$0xff]
        %v521 = vld [vmem:[%s210 + $0x8] sm:$0xff]
        %v522 = vld [vmem:[%s210 + $0x10] sm:$0xff]
        %v523 = vld [vmem:[%s210 + $0x18] sm:$0xff]
        %v524 = vld [vmem:[%s210 + $0x20] sm:$0xff]
        %v525 = vld [vmem:[%s210 + $0x28] sm:$0xff]
        %v526 = vld [vmem:[%s210 + $0x30] sm:$0xff]
        %v527 = vld [vmem:[%s210 + $0x38] sm:$0xff]
        %v528 = vld [vmem:[%s210 + $0x40] sm:$0xff]
        %v529 = vld [vmem:[%s210 + $0x48] sm:$0xff]
        %v530 = vld [vmem:[%s210 + $0x50] sm:$0xff]
        %v531 = vld [vmem:[%s210 + $0x58] sm:$0xff]
        %v532 = vld [vmem:[%s210 + $0x60] sm:$0xff]
        %v533 = vld [vmem:[%s210 + $0x68] sm:$0xff]
        %v534 = vld [vmem:[%s210 + $0x70] sm:$0xff]
        %v535 = vld [vmem:[%s210 + $0x78] sm:$0xff]
        %s536 = sshra.s32 %s214, 4
        %s537 = sand.u32 %s214, 15
        %s538 = smul.addr %s536, 8
        %s539 = scalar_lea.vmem [#allocation2], %s538
        %v540 = vld [vmem:[%s539] sm:$0xff]
        %v541 = vld [vmem:[%s539 + $0x8] sm:$0xff]
        %v542 = vld [vmem:[%s539 + $0x10] sm:$0xff]
        %v543 = vld [vmem:[%s539 + $0x18] sm:$0xff]
        %v544 = vld [vmem:[%s539 + $0x20] sm:$0xff]
        %v545 = vld [vmem:[%s539 + $0x28] sm:$0xff]
        %v546 = vld [vmem:[%s539 + $0x30] sm:$0xff]
        %v547 = vld [vmem:[%s539 + $0x38] sm:$0xff]
        %v564 = vunpack.c.l.b16 %v501
        %v565 = vunpack.c.l.b16 %v502
        %v566 = vunpack.c.l.b16 %v503
        %v567 = vunpack.c.l.b16 %v504
        %v568 = vunpack.c.l.b16 %v505
        %v569 = vunpack.c.l.b16 %v506
        %v570 = vunpack.c.l.b16 %v507
        %v571 = vunpack.c.l.b16 %v508
        %v572 = vunpack.c.l.b16 %v509
        %v573 = vunpack.c.l.b16 %v510
        %v574 = vunpack.c.l.b16 %v511
        %v575 = vunpack.c.l.b16 %v512
        %v576 = vunpack.c.l.b16 %v513
        %v577 = vunpack.c.l.b16 %v514
        %v578 = vunpack.c.l.b16 %v515
        %v579 = vunpack.c.l.b16 %v516
        %v580 = vpack.c.b16 %v565, %v564
        %v581 = vpack.c.b16 %v567, %v566
        %v582 = vpack.c.b16 %v569, %v568
        %v583 = vpack.c.b16 %v571, %v570
        %v584 = vpack.c.b16 %v573, %v572
        %v585 = vpack.c.b16 %v575, %v574
        %v586 = vpack.c.b16 %v577, %v576
        %v587 = vpack.c.b16 %v579, %v578
        %596 = vmatprep.subr.bf16.mxu0 0
        %597 = vmatpush1.bf16.msra.mxu0 %v540
        %598 = vmatprep.subr.bf16.mxu0 0
        %599 = vmatpush1.bf16.msra.mxu0 %v541
        %600 = vmatprep.subr.bf16.mxu0 0
        %601 = vmatpush1.bf16.msra.mxu0 %v542
        %602 = vmatprep.subr.bf16.mxu0 0
        %603 = vmatpush1.bf16.msra.mxu0 %v543
        %604 = vmatprep.subr.bf16.mxu0 0
        %605 = vmatpush1.bf16.msra.mxu0 %v544
        %606 = vmatprep.subr.bf16.mxu0 0
        %607 = vmatpush1.bf16.msra.mxu0 %v545
        %608 = vmatprep.subr.bf16.mxu0 0
        %609 = vmatpush1.bf16.msra.mxu0 %v546
        %610 = vmatprep.subr.bf16.mxu0 0
        %611 = vmatpush1.bf16.msra.mxu0 %v547
        %612 = vmatprep.subr.bf16.mxu0 0
        %613 = vmatpush1.bf16.msra.mxu0 0
        %614 = vmatprep.subr.bf16.mxu0 0
        %615 = vmatpush1.bf16.msra.mxu0 0
        %616 = vmatprep.subr.bf16.mxu0 0
        %617 = vmatpush1.bf16.msra.mxu0 0
        %618 = vmatprep.subr.bf16.mxu0 0
        %619 = vmatpush1.bf16.msra.mxu0 0
        %620 = vmatprep.subr.bf16.mxu0 0
        %621 = vmatpush1.bf16.msra.mxu0 0
        %622 = vmatprep.subr.bf16.mxu0 0
        %623 = vmatpush1.bf16.msra.mxu0 0
        %624 = vmatprep.subr.bf16.mxu0 0
        %625 = vmatpush1.bf16.msra.mxu0 0
        %626 = vmatprep.subr.bf16.mxu0 0
        %627 = vmatpush1.bf16.msra.mxu0 0
        %628 = vmatprep.mubr.bf16.mxu0 0
        %629 = vmatmul.mubr.bf16.gmra.mrb[0].mxu0 %v580
        %v630 = vpop.f32.mrb[0].mxu0
        %v631 = vadd.f32 0.0, %v630
        %v632 = vpop.f32.mrb[0].mxu0
        %v633 = vpop.f32.mrb[0].mxu0
        %v634 = vadd.f32 0.0, %v633
        %v635 = vpop.f32.mrb[0].mxu0
        %636 = vmatprep.mubr.bf16.mxu0 0
        %637 = vmatmul.mubr.bf16.gmra.mrb[0].mxu0 %v581
        %v638 = vpop.f32.mrb[0].mxu0
        %v639 = vadd.f32 0.0, %v638
        %v640 = vpop.f32.mrb[0].mxu0
        %v641 = vpop.f32.mrb[0].mxu0
        %v642 = vadd.f32 0.0, %v641
        %v643 = vpop.f32.mrb[0].mxu0
        %644 = vmatprep.mubr.bf16.mxu0 0
        %645 = vmatmul.mubr.bf16.gmra.mrb[0].mxu0 %v582
        %v646 = vpop.f32.mrb[0].mxu0
        %v647 = vadd.f32 0.0, %v646
        %v648 = vpop.f32.mrb[0].mxu0
        %v649 = vpop.f32.mrb[0].mxu0
        %v650 = vadd.f32 0.0, %v649
        %v651 = vpop.f32.mrb[0].mxu0
        %652 = vmatprep.mubr.bf16.mxu0 0
        %653 = vmatmul.mubr.bf16.gmra.mrb[0].mxu0 %v583
        %v654 = vpop.f32.mrb[0].mxu0
        %v655 = vadd.f32 0.0, %v654
        %v656 = vpop.f32.mrb[0].mxu0
        %v657 = vpop.f32.mrb[0].mxu0
        %v658 = vadd.f32 0.0, %v657
        %v659 = vpop.f32.mrb[0].mxu0
        %660 = vmatprep.mubr.bf16.mxu0 0
        %661 = vmatmul.mubr.bf16.gmra.mrb[0].mxu0 %v584
        %v662 = vpop.f32.mrb[0].mxu0
        %v663 = vadd.f32 0.0, %v662
        %v664 = vpop.f32.mrb[0].mxu0
        %v665 = vpop.f32.mrb[0].mxu0
        %v666 = vadd.f32 0.0, %v665
        %v667 = vpop.f32.mrb[0].mxu0
        %668 = vmatprep.mubr.bf16.mxu0 0
        %669 = vmatmul.mubr.bf16.gmra.mrb[0].mxu0 %v585
        %v670 = vpop.f32.mrb[0].mxu0
        %v671 = vadd.f32 0.0, %v670
        %v672 = vpop.f32.mrb[0].mxu0
        %v673 = vpop.f32.mrb[0].mxu0
        %v674 = vadd.f32 0.0, %v673
        %v675 = vpop.f32.mrb[0].mxu0
        %676 = vmatprep.mubr.bf16.mxu0 0
        %677 = vmatmul.mubr.bf16.gmra.mrb[0].mxu0 %v586
        %v678 = vpop.f32.mrb[0].mxu0
        %v679 = vadd.f32 0.0, %v678
        %v680 = vpop.f32.mrb[0].mxu0
        %v681 = vpop.f32.mrb[0].mxu0
        %v682 = vadd.f32 0.0, %v681
        %v683 = vpop.f32.mrb[0].mxu0
        %684 = vmatprep.mubr.bf16.mxu0 0
        %685 = vmatmul.mubr.bf16.gmra.mrb[0].mxu0 %v587
        %v686 = vpop.f32.mrb[0].mxu0
        %v687 = vadd.f32 0.0, %v686
        %v688 = vpop.f32.mrb[0].mxu0
        %v689 = vpop.f32.mrb[0].mxu0
        %v690 = vadd.f32 0.0, %v689
        %v691 = vpop.f32.mrb[0].mxu0
        %692 = vdwg.mxu0
        %v693 = vadd.f32 %v520, %v631
        %v694 = vadd.f32 %v521, %v634
        %v695 = vadd.f32 %v522, %v639
        %v696 = vadd.f32 %v523, %v642
        %v697 = vadd.f32 %v524, %v647
        %v698 = vadd.f32 %v525, %v650
        %v699 = vadd.f32 %v526, %v655
        %v700 = vadd.f32 %v527, %v658
        %v701 = vadd.f32 %v528, %v663
        %v702 = vadd.f32 %v529, %v666
        %v703 = vadd.f32 %v530, %v671
        %v704 = vadd.f32 %v531, %v674
        %v705 = vadd.f32 %v532, %v679
        %v706 = vadd.f32 %v533, %v682
        %v707 = vadd.f32 %v534, %v687
        %v708 = vadd.f32 %v535, %v690
        %709 = vst [vmem:[%s210] sm:$0xff] %v693
        %710 = vst [vmem:[%s210 + $0x8] sm:$0xff] %v694
        %711 = vst [vmem:[%s210 + $0x10] sm:$0xff] %v695
        %712 = vst [vmem:[%s210 + $0x18] sm:$0xff] %v696
        %713 = vst [vmem:[%s210 + $0x20] sm:$0xff] %v697
        %714 = vst [vmem:[%s210 + $0x28] sm:$0xff] %v698
        %715 = vst [vmem:[%s210 + $0x30] sm:$0xff] %v699
        %716 = vst [vmem:[%s210 + $0x38] sm:$0xff] %v700
        %717 = vst [vmem:[%s210 + $0x40] sm:$0xff] %v701
        %718 = vst [vmem:[%s210 + $0x48] sm:$0xff] %v702
        %719 = vst [vmem:[%s210 + $0x50] sm:$0xff] %v703
        %720 = vst [vmem:[%s210 + $0x58] sm:$0xff] %v704
        %721 = vst [vmem:[%s210 + $0x60] sm:$0xff] %v705
        %722 = vst [vmem:[%s210 + $0x68] sm:$0xff] %v706
        %723 = vst [vmem:[%s210 + $0x70] sm:$0xff] %v707
        %724 = vst [vmem:[%s210 + $0x78] sm:$0xff] %v708
      $region48: #{pyg_net_forward.1} parent=35 // pred_fallthru
        _
      %p725 = scmp.ne.s32.totalorder %s226, 0
      // Predicated region
      $region49: #{pyg_net_forward.1} parent=35 // pred_check
        %p726 = pneg %p725
      $region50: #{pyg_net_forward.1} parent=35 // pred_check_branch
        %728 = sbr.rel (%p726) target = $region52
      $region51: #{pyg_net_forward.1} parent=35 // pred_region
        %v729 = vld [vmem:[%s210] sm:$0xff]
        %v730 = vld [vmem:[%s210 + $0x8] sm:$0xff]
        %v731 = vld [vmem:[%s210 + $0x10] sm:$0xff]
        %v732 = vld [vmem:[%s210 + $0x18] sm:$0xff]
        %v733 = vld [vmem:[%s210 + $0x20] sm:$0xff]
        %v734 = vld [vmem:[%s210 + $0x28] sm:$0xff]
        %v735 = vld [vmem:[%s210 + $0x30] sm:$0xff]
        %v736 = vld [vmem:[%s210 + $0x38] sm:$0xff]
        %v737 = vld [vmem:[%s210 + $0x40] sm:$0xff]
        %v738 = vld [vmem:[%s210 + $0x48] sm:$0xff]
        %v739 = vld [vmem:[%s210 + $0x50] sm:$0xff]
        %v740 = vld [vmem:[%s210 + $0x58] sm:$0xff]
        %v741 = vld [vmem:[%s210 + $0x60] sm:$0xff]
        %v742 = vld [vmem:[%s210 + $0x68] sm:$0xff]
        %v743 = vld [vmem:[%s210 + $0x70] sm:$0xff]
        %v744 = vld [vmem:[%s210 + $0x78] sm:$0xff]
        %s745 = sshra.s32 %s214, 4
        %s746 = sand.u32 %s214, 15
        %s747 = smul.addr %s745, 8
        %s748 = scalar_lea.vmem [#allocation3], %s747
        %v749 = vld [vmem:[%s748] sm:$0xff]
        %v750 = vld [vmem:[%s748 + $0x8] sm:$0xff]
        %v751 = vld [vmem:[%s748 + $0x10] sm:$0xff]
        %v752 = vld [vmem:[%s748 + $0x18] sm:$0xff]
        %v753 = vld [vmem:[%s748 + $0x20] sm:$0xff]
        %v754 = vld [vmem:[%s748 + $0x28] sm:$0xff]
        %v755 = vld [vmem:[%s748 + $0x30] sm:$0xff]
        %v756 = vld [vmem:[%s748 + $0x38] sm:$0xff]
        %v773 = vunpack.c.l.b16 %v501
        %v774 = vunpack.c.l.b16 %v502
        %v775 = vunpack.c.l.b16 %v503
        %v776 = vunpack.c.l.b16 %v504
        %v777 = vunpack.c.l.b16 %v505
        %v778 = vunpack.c.l.b16 %v506
        %v779 = vunpack.c.l.b16 %v507
        %v780 = vunpack.c.l.b16 %v508
        %v781 = vunpack.c.l.b16 %v509
        %v782 = vunpack.c.l.b16 %v510
        %v783 = vunpack.c.l.b16 %v511
        %v784 = vunpack.c.l.b16 %v512
        %v785 = vunpack.c.l.b16 %v513
        %v786 = vunpack.c.l.b16 %v514
        %v787 = vunpack.c.l.b16 %v515
        %v788 = vunpack.c.l.b16 %v516
        %v789 = vpack.c.b16 %v774, %v773
        %v790 = vpack.c.b16 %v776, %v775
        %v791 = vpack.c.b16 %v778, %v777
        %v792 = vpack.c.b16 %v780, %v779
        %v793 = vpack.c.b16 %v782, %v781
        %v794 = vpack.c.b16 %v784, %v783
        %v795 = vpack.c.b16 %v786, %v785
        %v796 = vpack.c.b16 %v788, %v787
        %805 = vmatprep.subr.bf16.mxu0 0
        %806 = vmatpush1.bf16.msra.mxu0 %v749
        %807 = vmatprep.subr.bf16.mxu0 0
        %808 = vmatpush1.bf16.msra.mxu0 %v750
        %809 = vmatprep.subr.bf16.mxu0 0
        %810 = vmatpush1.bf16.msra.mxu0 %v751
        %811 = vmatprep.subr.bf16.mxu0 0
        %812 = vmatpush1.bf16.msra.mxu0 %v752
        %813 = vmatprep.subr.bf16.mxu0 0
        %814 = vmatpush1.bf16.msra.mxu0 %v753
        %815 = vmatprep.subr.bf16.mxu0 0
        %816 = vmatpush1.bf16.msra.mxu0 %v754
        %817 = vmatprep.subr.bf16.mxu0 0
        %818 = vmatpush1.bf16.msra.mxu0 %v755
        %819 = vmatprep.subr.bf16.mxu0 0
        %820 = vmatpush1.bf16.msra.mxu0 %v756
        %821 = vmatprep.subr.bf16.mxu0 0
        %822 = vmatpush1.bf16.msra.mxu0 0
        %823 = vmatprep.subr.bf16.mxu0 0
        %824 = vmatpush1.bf16.msra.mxu0 0
        %825 = vmatprep.subr.bf16.mxu0 0
        %826 = vmatpush1.bf16.msra.mxu0 0
        %827 = vmatprep.subr.bf16.mxu0 0
        %828 = vmatpush1.bf16.msra.mxu0 0
        %829 = vmatprep.subr.bf16.mxu0 0
        %830 = vmatpush1.bf16.msra.mxu0 0
        %831 = vmatprep.subr.bf16.mxu0 0
        %832 = vmatpush1.bf16.msra.mxu0 0
        %833 = vmatprep.subr.bf16.mxu0 0
        %834 = vmatpush1.bf16.msra.mxu0 0
        %835 = vmatprep.subr.bf16.mxu0 0
        %836 = vmatpush1.bf16.msra.mxu0 0
        %837 = vmatprep.mubr.bf16.mxu0 0
        %838 = vmatmul.mubr.bf16.gmra.mrb[0].mxu0 %v789
        %v839 = vpop.f32.mrb[0].mxu0
        %v840 = vadd.f32 0.0, %v839
        %v841 = vpop.f32.mrb[0].mxu0
        %v842 = vpop.f32.mrb[0].mxu0
        %v843 = vadd.f32 0.0, %v842
        %v844 = vpop.f32.mrb[0].mxu0
        %845 = vmatprep.mubr.bf16.mxu0 0
        %846 = vmatmul.mubr.bf16.gmra.mrb[0].mxu0 %v790
        %v847 = vpop.f32.mrb[0].mxu0
        %v848 = vadd.f32 0.0, %v847
        %v849 = vpop.f32.mrb[0].mxu0
        %v850 = vpop.f32.mrb[0].mxu0
        %v851 = vadd.f32 0.0, %v850
        %v852 = vpop.f32.mrb[0].mxu0
        %853 = vmatprep.mubr.bf16.mxu0 0
        %854 = vmatmul.mubr.bf16.gmra.mrb[0].mxu0 %v791
        %v855 = vpop.f32.mrb[0].mxu0
        %v856 = vadd.f32 0.0, %v855
        %v857 = vpop.f32.mrb[0].mxu0
        %v858 = vpop.f32.mrb[0].mxu0
        %v859 = vadd.f32 0.0, %v858
        %v860 = vpop.f32.mrb[0].mxu0
        %861 = vmatprep.mubr.bf16.mxu0 0
        %862 = vmatmul.mubr.bf16.gmra.mrb[0].mxu0 %v792
        %v863 = vpop.f32.mrb[0].mxu0
        %v864 = vadd.f32 0.0, %v863
        %v865 = vpop.f32.mrb[0].mxu0
        %v866 = vpop.f32.mrb[0].mxu0
        %v867 = vadd.f32 0.0, %v866
        %v868 = vpop.f32.mrb[0].mxu0
        %869 = vmatprep.mubr.bf16.mxu0 0
        %870 = vmatmul.mubr.bf16.gmra.mrb[0].mxu0 %v793
        %v871 = vpop.f32.mrb[0].mxu0
        %v872 = vadd.f32 0.0, %v871
        %v873 = vpop.f32.mrb[0].mxu0
        %v874 = vpop.f32.mrb[0].mxu0
        %v875 = vadd.f32 0.0, %v874
        %v876 = vpop.f32.mrb[0].mxu0
        %877 = vmatprep.mubr.bf16.mxu0 0
        %878 = vmatmul.mubr.bf16.gmra.mrb[0].mxu0 %v794
        %v879 = vpop.f32.mrb[0].mxu0
        %v880 = vadd.f32 0.0, %v879
        %v881 = vpop.f32.mrb[0].mxu0
        %v882 = vpop.f32.mrb[0].mxu0
        %v883 = vadd.f32 0.0, %v882
        %v884 = vpop.f32.mrb[0].mxu0
        %885 = vmatprep.mubr.bf16.mxu0 0
        %886 = vmatmul.mubr.bf16.gmra.mrb[0].mxu0 %v795
        %v887 = vpop.f32.mrb[0].mxu0
        %v888 = vadd.f32 0.0, %v887
        %v889 = vpop.f32.mrb[0].mxu0
        %v890 = vpop.f32.mrb[0].mxu0
        %v891 = vadd.f32 0.0, %v890
        %v892 = vpop.f32.mrb[0].mxu0
        %893 = vmatprep.mubr.bf16.mxu0 0
        %894 = vmatmul.mubr.bf16.gmra.mrb[0].mxu0 %v796
        %v895 = vpop.f32.mrb[0].mxu0
        %v896 = vadd.f32 0.0, %v895
        %v897 = vpop.f32.mrb[0].mxu0
        %v898 = vpop.f32.mrb[0].mxu0
        %v899 = vadd.f32 0.0, %v898
        %v900 = vpop.f32.mrb[0].mxu0
        %901 = vdwg.mxu0
        %v902 = vadd.f32 %v729, %v840
        %v903 = vadd.f32 %v730, %v843
        %v904 = vadd.f32 %v731, %v848
        %v905 = vadd.f32 %v732, %v851
        %v906 = vadd.f32 %v733, %v856
        %v907 = vadd.f32 %v734, %v859
        %v908 = vadd.f32 %v735, %v864
        %v909 = vadd.f32 %v736, %v867
        %v910 = vadd.f32 %v737, %v872
        %v911 = vadd.f32 %v738, %v875
        %v912 = vadd.f32 %v739, %v880
        %v913 = vadd.f32 %v740, %v883
        %v914 = vadd.f32 %v741, %v888
        %v915 = vadd.f32 %v742, %v891
        %v916 = vadd.f32 %v743, %v896
        %v917 = vadd.f32 %v744, %v899
        %918 = vst [vmem:[%s210] sm:$0xff] %v902
        %919 = vst [vmem:[%s210 + $0x8] sm:$0xff] %v903
        %920 = vst [vmem:[%s210 + $0x10] sm:$0xff] %v904
        %921 = vst [vmem:[%s210 + $0x18] sm:$0xff] %v905
        %922 = vst [vmem:[%s210 + $0x20] sm:$0xff] %v906
        %923 = vst [vmem:[%s210 + $0x28] sm:$0xff] %v907
        %924 = vst [vmem:[%s210 + $0x30] sm:$0xff] %v908
        %925 = vst [vmem:[%s210 + $0x38] sm:$0xff] %v909
        %926 = vst [vmem:[%s210 + $0x40] sm:$0xff] %v910
        %927 = vst [vmem:[%s210 + $0x48] sm:$0xff] %v911
        %928 = vst [vmem:[%s210 + $0x50] sm:$0xff] %v912
        %929 = vst [vmem:[%s210 + $0x58] sm:$0xff] %v913
        %930 = vst [vmem:[%s210 + $0x60] sm:$0xff] %v914
        %931 = vst [vmem:[%s210 + $0x68] sm:$0xff] %v915
        %932 = vst [vmem:[%s210 + $0x70] sm:$0xff] %v916
        %933 = vst [vmem:[%s210 + $0x78] sm:$0xff] %v917
      $region52: #{pyg_net_forward.1} parent=35 // pred_fallthru
        _
      // Predicated region
      $region53: #{pyg_net_forward.1} parent=35 // pred_check
        %p934 = pneg %p230
      $region54: #{pyg_net_forward.1} parent=35 // pred_check_branch
        %936 = sbr.rel (%p934) target = $region56
      $region55: #{pyg_net_forward.1} parent=35 // pred_region
        %v937 = vld [vmem:[%s210] sm:$0xff]
        %v938 = vld [vmem:[%s210 + $0x8] sm:$0xff]
        %v939 = vld [vmem:[%s210 + $0x10] sm:$0xff]
        %v940 = vld [vmem:[%s210 + $0x18] sm:$0xff]
        %v941 = vld [vmem:[%s210 + $0x20] sm:$0xff]
        %v942 = vld [vmem:[%s210 + $0x28] sm:$0xff]
        %v943 = vld [vmem:[%s210 + $0x30] sm:$0xff]
        %v944 = vld [vmem:[%s210 + $0x38] sm:$0xff]
        %v945 = vld [vmem:[%s210 + $0x40] sm:$0xff]
        %v946 = vld [vmem:[%s210 + $0x48] sm:$0xff]
        %v947 = vld [vmem:[%s210 + $0x50] sm:$0xff]
        %v948 = vld [vmem:[%s210 + $0x58] sm:$0xff]
        %v949 = vld [vmem:[%s210 + $0x60] sm:$0xff]
        %v950 = vld [vmem:[%s210 + $0x68] sm:$0xff]
        %v951 = vld [vmem:[%s210 + $0x70] sm:$0xff]
        %v952 = vld [vmem:[%s210 + $0x78] sm:$0xff]
        %v953 = vld [vmem:[%s205] sm:$0x1]
        %v955 = vlaneseq
        %v956 = vshrl.u32 %v955, 7
        %v957 = vsub.s32 0, %v956
        %v958 = vrot.slane %v953, %v957
        %v960 = vadd.f32 %v937, %v958
        %v961 = vadd.f32 %v938, %v958
        %v962 = vadd.f32 %v939, %v958
        %v963 = vadd.f32 %v940, %v958
        %v964 = vadd.f32 %v941, %v958
        %v965 = vadd.f32 %v942, %v958
        %v966 = vadd.f32 %v943, %v958
        %v967 = vadd.f32 %v944, %v958
        %v968 = vadd.f32 %v945, %v958
        %v969 = vadd.f32 %v946, %v958
        %v970 = vadd.f32 %v947, %v958
        %v971 = vadd.f32 %v948, %v958
        %v972 = vadd.f32 %v949, %v958
        %v973 = vadd.f32 %v950, %v958
        %v974 = vadd.f32 %v951, %v958
        %v975 = vadd.f32 %v952, %v958
        %p976 = scmp.lt.s32.totalorder %s20, 2
        // Predicated region
        $region57: #{pyg_net_forward.1} parent=55 // pred_check
          %p977 = pneg %p976
        $region58: #{pyg_net_forward.1} parent=55 // pred_check_branch
          %979 = sbr.rel (%p977) target = $region60
        $region59: #{pyg_net_forward.1} parent=55 // pred_region
          %v980 = vmax.f32 %v960, 0.0
          %v981 = vmax.f32 %v961, 0.0
          %v982 = vmax.f32 %v962, 0.0
          %v983 = vmax.f32 %v963, 0.0
          %v984 = vmax.f32 %v964, 0.0
          %v985 = vmax.f32 %v965, 0.0
          %v986 = vmax.f32 %v966, 0.0
          %v987 = vmax.f32 %v967, 0.0
          %v988 = vmax.f32 %v968, 0.0
          %v989 = vmax.f32 %v969, 0.0
          %v990 = vmax.f32 %v970, 0.0
          %v991 = vmax.f32 %v971, 0.0
          %v992 = vmax.f32 %v972, 0.0
          %v993 = vmax.f32 %v973, 0.0
          %v994 = vmax.f32 %v974, 0.0
          %v995 = vmax.f32 %v975, 0.0
          %v996 = vpack.c.bf16 %v981, %v980
          %v997 = vpack.c.bf16 %v983, %v982
          %v998 = vpack.c.bf16 %v985, %v984
          %v999 = vpack.c.bf16 %v987, %v986
          %v1000 = vpack.c.bf16 %v989, %v988
          %v1001 = vpack.c.bf16 %v991, %v990
          %v1002 = vpack.c.bf16 %v993, %v992
          %v1003 = vpack.c.bf16 %v995, %v994
          %s1004 = sadd.s32 %s20, 1
          %s1005 = smul.u32 %s1004, 16
          %s1006 = smul.addr %s1005, 4
          %s1007 = scalar_lea.vmem %s2, %s1006
          %v1008 = vld [vmem:[%s1007] sm:$0xf]
          %v1009 = vld [vmem:[%s1007 + $0x4] sm:$0xf]
          %v1010 = vld [vmem:[%s1007 + $0x8] sm:$0xf]
          %v1011 = vld [vmem:[%s1007 + $0xc] sm:$0xf]
          %v1012 = vld [vmem:[%s1007 + $0x10] sm:$0xf]
          %v1013 = vld [vmem:[%s1007 + $0x14] sm:$0xf]
          %v1014 = vld [vmem:[%s1007 + $0x18] sm:$0xf]
          %v1015 = vld [vmem:[%s1007 + $0x1c] sm:$0xf]
          %v1016 = vld [vmem:[%s1007 + $0x20] sm:$0xf]
          %v1017 = vld [vmem:[%s1007 + $0x24] sm:$0xf]
          %v1018 = vld [vmem:[%s1007 + $0x28] sm:$0xf]
          %v1019 = vld [vmem:[%s1007 + $0x2c] sm:$0xf]
          %v1020 = vld [vmem:[%s1007 + $0x30] sm:$0xf]
          %v1021 = vld [vmem:[%s1007 + $0x34] sm:$0xf]
          %v1022 = vld [vmem:[%s1007 + $0x38] sm:$0xf]
          %v1023 = vld [vmem:[%s1007 + $0x3c] sm:$0xf]
          %v1040 = vunpack.c.l.b16 %v1008
          %v1041 = vunpack.c.l.b16 %v1009
          %v1042 = vunpack.c.l.b16 %v1010
          %v1043 = vunpack.c.l.b16 %v1011
          %v1044 = vunpack.c.l.b16 %v1012
          %v1045 = vunpack.c.l.b16 %v1013
          %v1046 = vunpack.c.l.b16 %v1014
          %v1047 = vunpack.c.l.b16 %v1015
          %v1048 = vunpack.c.l.b16 %v1016
          %v1049 = vunpack.c.l.b16 %v1017
          %v1050 = vunpack.c.l.b16 %v1018
          %v1051 = vunpack.c.l.b16 %v1019
          %v1052 = vunpack.c.l.b16 %v1020
          %v1053 = vunpack.c.l.b16 %v1021
          %v1054 = vunpack.c.l.b16 %v1022
          %v1055 = vunpack.c.l.b16 %v1023
          %v1056 = vpack.c.b16 %v1041, %v1040
          %v1057 = vpack.c.b16 %v1043, %v1042
          %v1058 = vpack.c.b16 %v1045, %v1044
          %v1059 = vpack.c.b16 %v1047, %v1046
          %v1060 = vpack.c.b16 %v1049, %v1048
          %v1061 = vpack.c.b16 %v1051, %v1050
          %v1062 = vpack.c.b16 %v1053, %v1052
          %v1063 = vpack.c.b16 %v1055, %v1054
          %1072 = vmatprep.subr.bf16.mxu0 0
          %1073 = vmatpush1.bf16.msra.mxu0 %v1056
          %1074 = vmatprep.subr.bf16.mxu0 0
          %1075 = vmatpush1.bf16.msra.mxu0 %v1057
          %1076 = vmatprep.subr.bf16.mxu0 0
          %1077 = vmatpush1.bf16.msra.mxu0 %v1058
          %1078 = vmatprep.subr.bf16.mxu0 0
          %1079 = vmatpush1.bf16.msra.mxu0 %v1059
          %1080 = vmatprep.subr.bf16.mxu0 0
          %1081 = vmatpush1.bf16.msra.mxu0 %v1060
          %1082 = vmatprep.subr.bf16.mxu0 0
          %1083 = vmatpush1.bf16.msra.mxu0 %v1061
          %1084 = vmatprep.subr.bf16.mxu0 0
          %1085 = vmatpush1.bf16.msra.mxu0 %v1062
          %1086 = vmatprep.subr.bf16.mxu0 0
          %1087 = vmatpush1.bf16.msra.mxu0 %v1063
          %1088 = vmatprep.subr.bf16.mxu0 0
          %1089 = vmatpush1.bf16.msra.mxu0 0
          %1090 = vmatprep.subr.bf16.mxu0 0
          %1091 = vmatpush1.bf16.msra.mxu0 0
          %1092 = vmatprep.subr.bf16.mxu0 0
          %1093 = vmatpush1.bf16.msra.mxu0 0
          %1094 = vmatprep.subr.bf16.mxu0 0
          %1095 = vmatpush1.bf16.msra.mxu0 0
          %1096 = vmatprep.subr.bf16.mxu0 0
          %1097 = vmatpush1.bf16.msra.mxu0 0
          %1098 = vmatprep.subr.bf16.mxu0 0
          %1099 = vmatpush1.bf16.msra.mxu0 0
          %1100 = vmatprep.subr.bf16.mxu0 0
          %1101 = vmatpush1.bf16.msra.mxu0 0
          %1102 = vmatprep.subr.bf16.mxu0 0
          %1103 = vmatpush1.bf16.msra.mxu0 0
          %1104 = vmatprep.mubr.bf16.mxu0 0
          %1105 = vmatmul.mubr.bf16.gmra.mrb[0].mxu0 %v996
          %v1106 = vpop.f32.mrb[0].mxu0
          %v1107 = vadd.f32 0.0, %v1106
          %v1108 = vpop.f32.mrb[0].mxu0
          %v1109 = vpop.f32.mrb[0].mxu0
          %v1110 = vadd.f32 0.0, %v1109
          %v1111 = vpop.f32.mrb[0].mxu0
          %1112 = vmatprep.mubr.bf16.mxu0 0
          %1113 = vmatmul.mubr.bf16.gmra.mrb[0].mxu0 %v997
          %v1114 = vpop.f32.mrb[0].mxu0
          %v1115 = vadd.f32 0.0, %v1114
          %v1116 = vpop.f32.mrb[0].mxu0
          %v1117 = vpop.f32.mrb[0].mxu0
          %v1118 = vadd.f32 0.0, %v1117
          %v1119 = vpop.f32.mrb[0].mxu0
          %1120 = vmatprep.mubr.bf16.mxu0 0
          %1121 = vmatmul.mubr.bf16.gmra.mrb[0].mxu0 %v998
          %v1122 = vpop.f32.mrb[0].mxu0
          %v1123 = vadd.f32 0.0, %v1122
          %v1124 = vpop.f32.mrb[0].mxu0
          %v1125 = vpop.f32.mrb[0].mxu0
          %v1126 = vadd.f32 0.0, %v1125
          %v1127 = vpop.f32.mrb[0].mxu0
          %1128 = vmatprep.mubr.bf16.mxu0 0
          %1129 = vmatmul.mubr.bf16.gmra.mrb[0].mxu0 %v999
          %v1130 = vpop.f32.mrb[0].mxu0
          %v1131 = vadd.f32 0.0, %v1130
          %v1132 = vpop.f32.mrb[0].mxu0
          %v1133 = vpop.f32.mrb[0].mxu0
          %v1134 = vadd.f32 0.0, %v1133
          %v1135 = vpop.f32.mrb[0].mxu0
          %1136 = vmatprep.mubr.bf16.mxu0 0
          %1137 = vmatmul.mubr.bf16.gmra.mrb[0].mxu0 %v1000
          %v1138 = vpop.f32.mrb[0].mxu0
          %v1139 = vadd.f32 0.0, %v1138
          %v1140 = vpop.f32.mrb[0].mxu0
          %v1141 = vpop.f32.mrb[0].mxu0
          %v1142 = vadd.f32 0.0, %v1141
          %v1143 = vpop.f32.mrb[0].mxu0
          %1144 = vmatprep.mubr.bf16.mxu0 0
          %1145 = vmatmul.mubr.bf16.gmra.mrb[0].mxu0 %v1001
          %v1146 = vpop.f32.mrb[0].mxu0
          %v1147 = vadd.f32 0.0, %v1146
          %v1148 = vpop.f32.mrb[0].mxu0
          %v1149 = vpop.f32.mrb[0].mxu0
          %v1150 = vadd.f32 0.0, %v1149
          %v1151 = vpop.f32.mrb[0].mxu0
          %1152 = vmatprep.mubr.bf16.mxu0 0
          %1153 = vmatmul.mubr.bf16.gmra.mrb[0].mxu0 %v1002
          %v1154 = vpop.f32.mrb[0].mxu0
          %v1155 = vadd.f32 0.0, %v1154
          %v1156 = vpop.f32.mrb[0].mxu0
          %v1157 = vpop.f32.mrb[0].mxu0
          %v1158 = vadd.f32 0.0, %v1157
          %v1159 = vpop.f32.mrb[0].mxu0
          %1160 = vmatprep.mubr.bf16.mxu0 0
          %1161 = vmatmul.mubr.bf16.gmra.mrb[0].mxu0 %v1003
          %v1162 = vpop.f32.mrb[0].mxu0
          %v1163 = vadd.f32 0.0, %v1162
          %v1164 = vpop.f32.mrb[0].mxu0
          %v1165 = vpop.f32.mrb[0].mxu0
          %v1166 = vadd.f32 0.0, %v1165
          %v1167 = vpop.f32.mrb[0].mxu0
          %1168 = vdwg.mxu0
          %v1169 = vpack.c.bf16 %v1110, %v1107
          %v1170 = vpack.c.bf16 %v1118, %v1115
          %v1171 = vpack.c.bf16 %v1126, %v1123
          %v1172 = vpack.c.bf16 %v1134, %v1131
          %v1173 = vpack.c.bf16 %v1142, %v1139
          %v1174 = vpack.c.bf16 %v1150, %v1147
          %v1175 = vpack.c.bf16 %v1158, %v1155
          %v1176 = vpack.c.bf16 %v1166, %v1163
          // Predicated region
          $region61: #{pyg_net_forward.1} parent=59 // pred_check
            %p1177 = pneg %p227
          $region62: #{pyg_net_forward.1} parent=59 // pred_check_branch
            %1179 = sbr.rel (%p1177) target = $region64
          $region63: #{pyg_net_forward.1} parent=59 // pred_region
            %s1180 = sshra.s32 %s213, 4
            %s1181 = sand.u32 %s213, 15
            %s1182 = smul.addr %s1180, 8
            %s1183 = scalar_lea.vmem [#allocation3], %s1182
            %1184 = vst [vmem:[%s1183] sm:$0xff] %v1169
            %1185 = vst [vmem:[%s1183 + $0x8] sm:$0xff] %v1170
            %1186 = vst [vmem:[%s1183 + $0x10] sm:$0xff] %v1171
            %1187 = vst [vmem:[%s1183 + $0x18] sm:$0xff] %v1172
            %1188 = vst [vmem:[%s1183 + $0x20] sm:$0xff] %v1173
            %1189 = vst [vmem:[%s1183 + $0x28] sm:$0xff] %v1174
            %1190 = vst [vmem:[%s1183 + $0x30] sm:$0xff] %v1175
            %1191 = vst [vmem:[%s1183 + $0x38] sm:$0xff] %v1176
          $region64: #{pyg_net_forward.1} parent=59 // pred_fallthru
            _
          // Predicated region
          $region65: #{pyg_net_forward.1} parent=59 // pred_check
            %p1192 = pneg %p725
          $region66: #{pyg_net_forward.1} parent=59 // pred_check_branch
            %1194 = sbr.rel (%p1192) target = $region68
          $region67: #{pyg_net_forward.1} parent=59 // pred_region
            %s1195 = sshra.s32 %s213, 4
            %s1196 = sand.u32 %s213, 15
            %s1197 = smul.addr %s1195, 8
            %s1198 = scalar_lea.vmem [#allocation2], %s1197
            %1199 = vst [vmem:[%s1198] sm:$0xff] %v1169
            %1200 = vst [vmem:[%s1198 + $0x8] sm:$0xff] %v1170
            %1201 = vst [vmem:[%s1198 + $0x10] sm:$0xff] %v1171
            %1202 = vst [vmem:[%s1198 + $0x18] sm:$0xff] %v1172
            %1203 = vst [vmem:[%s1198 + $0x20] sm:$0xff] %v1173
            %1204 = vst [vmem:[%s1198 + $0x28] sm:$0xff] %v1174
            %1205 = vst [vmem:[%s1198 + $0x30] sm:$0xff] %v1175
            %1206 = vst [vmem:[%s1198 + $0x38] sm:$0xff] %v1176
          $region68: #{pyg_net_forward.1} parent=59 // pred_fallthru
            _
        $region60: #{pyg_net_forward.1} parent=55 // pred_fallthru
          _
        %p1207 = scmp.eq.s32.totalorder %s20, 2
        // Predicated region
        $region69: #{pyg_net_forward.1} parent=55 // pred_check
          %p1208 = pneg %p1207
        $region70: #{pyg_net_forward.1} parent=55 // pred_check_branch
          %1210 = sbr.rel (%p1208) target = $region72
        $region71: #{pyg_net_forward.1} parent=55 // pred_region
          %v1211 = vlaneseq
          %v1212 = vand.u32 %v1211, 127
          %vm1213 = vcmp.lt.s32.totalorder %v1212, 8
          %v1214 = vsel %vm1213, %v960, -1e+30
          %v1215 = vsel %vm1213, %v961, -1e+30
          %v1216 = vsel %vm1213, %v962, -1e+30
          %v1217 = vsel %vm1213, %v963, -1e+30
          %v1218 = vsel %vm1213, %v964, -1e+30
          %v1219 = vsel %vm1213, %v965, -1e+30
          %v1220 = vsel %vm1213, %v966, -1e+30
          %v1221 = vsel %vm1213, %v967, -1e+30
          %v1222 = vsel %vm1213, %v968, -1e+30
          %v1223 = vsel %vm1213, %v969, -1e+30
          %v1224 = vsel %vm1213, %v970, -1e+30
          %v1225 = vsel %vm1213, %v971, -1e+30
          %v1226 = vsel %vm1213, %v972, -1e+30
          %v1227 = vsel %vm1213, %v973, -1e+30
          %v1228 = vsel %vm1213, %v974, -1e+30
          %v1229 = vsel %vm1213, %v975, -1e+30
          %1230 = vmax.xlane.f32.xlu0 %v1214
          %v1231 = vpop.xlane.xlu0 %1230
          %1232 = vmax.xlane.f32.xlu0 %v1215
          %v1233 = vpop.xlane.xlu0 %1232
          %1234 = vmax.xlane.f32.xlu0 %v1216
          %v1235 = vpop.xlane.xlu0 %1234
          %1236 = vmax.xlane.f32.xlu0 %v1217
          %v1237 = vpop.xlane.xlu0 %1236
          %1238 = vmax.xlane.f32.xlu0 %v1218
          %v1239 = vpop.xlane.xlu0 %1238
          %1240 = vmax.xlane.f32.xlu0 %v1219
          %v1241 = vpop.xlane.xlu0 %1240
          %1242 = vmax.xlane.f32.xlu0 %v1220
          %v1243 = vpop.xlane.xlu0 %1242
          %1244 = vmax.xlane.f32.xlu0 %v1221
          %v1245 = vpop.xlane.xlu0 %1244
          %1246 = vmax.xlane.f32.xlu0 %v1222
          %v1247 = vpop.xlane.xlu0 %1246
          %1248 = vmax.xlane.f32.xlu0 %v1223
          %v1249 = vpop.xlane.xlu0 %1248
          %1250 = vmax.xlane.f32.xlu0 %v1224
          %v1251 = vpop.xlane.xlu0 %1250
          %1252 = vmax.xlane.f32.xlu0 %v1225
          %v1253 = vpop.xlane.xlu0 %1252
          %1254 = vmax.xlane.f32.xlu0 %v1226
          %v1255 = vpop.xlane.xlu0 %1254
          %1256 = vmax.xlane.f32.xlu0 %v1227
          %v1257 = vpop.xlane.xlu0 %1256
          %1258 = vmax.xlane.f32.xlu0 %v1228
          %v1259 = vpop.xlane.xlu0 %1258
          %1260 = vmax.xlane.f32.xlu0 %v1229
          %v1261 = vpop.xlane.xlu0 %1260
          %v1262 = vsub.f32 %v1214, %v1231
          %v1263 = vsub.f32 %v1215, %v1233
          %v1264 = vsub.f32 %v1216, %v1235
          %v1265 = vsub.f32 %v1217, %v1237
          %v1266 = vsub.f32 %v1218, %v1239
          %v1267 = vsub.f32 %v1219, %v1241
          %v1268 = vsub.f32 %v1220, %v1243
          %v1269 = vsub.f32 %v1221, %v1245
          %v1270 = vsub.f32 %v1222, %v1247
          %v1271 = vsub.f32 %v1223, %v1249
          %v1272 = vsub.f32 %v1224, %v1251
          %v1273 = vsub.f32 %v1225, %v1253
          %v1274 = vsub.f32 %v1226, %v1255
          %v1275 = vsub.f32 %v1227, %v1257
          %v1276 = vsub.f32 %v1228, %v1259
          %v1277 = vsub.f32 %v1229, %v1261
          %v1278 = vmul.f32 %v1262, 1.442695
          %v1279 = vpow.pop %v1278
          %v1280 = vmul.f32 %v1263, 1.442695
          %v1281 = vpow.pop %v1280
          %v1282 = vmul.f32 %v1264, 1.442695
          %v1283 = vpow.pop %v1282
          %v1284 = vmul.f32 %v1265, 1.442695
          %v1285 = vpow.pop %v1284
          %v1286 = vmul.f32 %v1266, 1.442695
          %v1287 = vpow.pop %v1286
          %v1288 = vmul.f32 %v1267, 1.442695
          %v1289 = vpow.pop %v1288
          %v1290 = vmul.f32 %v1268, 1.442695
          %v1291 = vpow.pop %v1290
          %v1292 = vmul.f32 %v1269, 1.442695
          %v1293 = vpow.pop %v1292
          %v1294 = vmul.f32 %v1270, 1.442695
          %v1295 = vpow.pop %v1294
          %v1296 = vmul.f32 %v1271, 1.442695
          %v1297 = vpow.pop %v1296
          %v1298 = vmul.f32 %v1272, 1.442695
          %v1299 = vpow.pop %v1298
          %v1300 = vmul.f32 %v1273, 1.442695
          %v1301 = vpow.pop %v1300
          %v1302 = vmul.f32 %v1274, 1.442695
          %v1303 = vpow.pop %v1302
          %v1304 = vmul.f32 %v1275, 1.442695
          %v1305 = vpow.pop %v1304
          %v1306 = vmul.f32 %v1276, 1.442695
          %v1307 = vpow.pop %v1306
          %v1308 = vmul.f32 %v1277, 1.442695
          %v1309 = vpow.pop %v1308
          %1310 = vadd.xlane.f32.xlu0 %v1279
          %v1311 = vpop.xlane.xlu0 %1310
          %1312 = vadd.xlane.f32.xlu0 %v1281
          %v1313 = vpop.xlane.xlu0 %1312
          %1314 = vadd.xlane.f32.xlu0 %v1283
          %v1315 = vpop.xlane.xlu0 %1314
          %1316 = vadd.xlane.f32.xlu0 %v1285
          %v1317 = vpop.xlane.xlu0 %1316
          %1318 = vadd.xlane.f32.xlu0 %v1287
          %v1319 = vpop.xlane.xlu0 %1318
          %1320 = vadd.xlane.f32.xlu0 %v1289
          %v1321 = vpop.xlane.xlu0 %1320
          %1322 = vadd.xlane.f32.xlu0 %v1291
          %v1323 = vpop.xlane.xlu0 %1322
          %1324 = vadd.xlane.f32.xlu0 %v1293
          %v1325 = vpop.xlane.xlu0 %1324
          %1326 = vadd.xlane.f32.xlu0 %v1295
          %v1327 = vpop.xlane.xlu0 %1326
          %1328 = vadd.xlane.f32.xlu0 %v1297
          %v1329 = vpop.xlane.xlu0 %1328
          %1330 = vadd.xlane.f32.xlu0 %v1299
          %v1331 = vpop.xlane.xlu0 %1330
          %1332 = vadd.xlane.f32.xlu0 %v1301
          %v1333 = vpop.xlane.xlu0 %1332
          %1334 = vadd.xlane.f32.xlu0 %v1303
          %v1335 = vpop.xlane.xlu0 %1334
          %1336 = vadd.xlane.f32.xlu0 %v1305
          %v1337 = vpop.xlane.xlu0 %1336
          %1338 = vadd.xlane.f32.xlu0 %v1307
          %v1339 = vpop.xlane.xlu0 %1338
          %1340 = vadd.xlane.f32.xlu0 %v1309
          %v1341 = vpop.xlane.xlu0 %1340
          %v1342 = vlog2.pop %v1311
          %v1343 = vmul.f32 %v1342, 0.6931472
          %v1344 = vlog2.pop %v1313
          %v1345 = vmul.f32 %v1344, 0.6931472
          %v1346 = vlog2.pop %v1315
          %v1347 = vmul.f32 %v1346, 0.6931472
          %v1348 = vlog2.pop %v1317
          %v1349 = vmul.f32 %v1348, 0.6931472
          %v1350 = vlog2.pop %v1319
          %v1351 = vmul.f32 %v1350, 0.6931472
          %v1352 = vlog2.pop %v1321
          %v1353 = vmul.f32 %v1352, 0.6931472
          %v1354 = vlog2.pop %v1323
          %v1355 = vmul.f32 %v1354, 0.6931472
          %v1356 = vlog2.pop %v1325
          %v1357 = vmul.f32 %v1356, 0.6931472
          %v1358 = vlog2.pop %v1327
          %v1359 = vmul.f32 %v1358, 0.6931472
          %v1360 = vlog2.pop %v1329
          %v1361 = vmul.f32 %v1360, 0.6931472
          %v1362 = vlog2.pop %v1331
          %v1363 = vmul.f32 %v1362, 0.6931472
          %v1364 = vlog2.pop %v1333
          %v1365 = vmul.f32 %v1364, 0.6931472
          %v1366 = vlog2.pop %v1335
          %v1367 = vmul.f32 %v1366, 0.6931472
          %v1368 = vlog2.pop %v1337
          %v1369 = vmul.f32 %v1368, 0.6931472
          %v1370 = vlog2.pop %v1339
          %v1371 = vmul.f32 %v1370, 0.6931472
          %v1372 = vlog2.pop %v1341
          %v1373 = vmul.f32 %v1372, 0.6931472
          %v1374 = vsub.f32 %v1262, %v1343
          %v1375 = vsub.f32 %v1263, %v1345
          %v1376 = vsub.f32 %v1264, %v1347
          %v1377 = vsub.f32 %v1265, %v1349
          %v1378 = vsub.f32 %v1266, %v1351
          %v1379 = vsub.f32 %v1267, %v1353
          %v1380 = vsub.f32 %v1268, %v1355
          %v1381 = vsub.f32 %v1269, %v1357
          %v1382 = vsub.f32 %v1270, %v1359
          %v1383 = vsub.f32 %v1271, %v1361
          %v1384 = vsub.f32 %v1272, %v1363
          %v1385 = vsub.f32 %v1273, %v1365
          %v1386 = vsub.f32 %v1274, %v1367
          %v1387 = vsub.f32 %v1275, %v1369
          %v1388 = vsub.f32 %v1276, %v1371
          %v1389 = vsub.f32 %v1277, %v1373
          %1390 = vst [vmem:[%s210] sm:$0xff] %v1374
          %1391 = vst [vmem:[%s210 + $0x8] sm:$0xff] %v1375
          %1392 = vst [vmem:[%s210 + $0x10] sm:$0xff] %v1376
          %1393 = vst [vmem:[%s210 + $0x18] sm:$0xff] %v1377
          %1394 = vst [vmem:[%s210 + $0x20] sm:$0xff] %v1378
          %1395 = vst [vmem:[%s210 + $0x28] sm:$0xff] %v1379
          %1396 = vst [vmem:[%s210 + $0x30] sm:$0xff] %v1380
          %1397 = vst [vmem:[%s210 + $0x38] sm:$0xff] %v1381
          %1398 = vst [vmem:[%s210 + $0x40] sm:$0xff] %v1382
          %1399 = vst [vmem:[%s210 + $0x48] sm:$0xff] %v1383
          %1400 = vst [vmem:[%s210 + $0x50] sm:$0xff] %v1384
          %1401 = vst [vmem:[%s210 + $0x58] sm:$0xff] %v1385
          %1402 = vst [vmem:[%s210 + $0x60] sm:$0xff] %v1386
          %1403 = vst [vmem:[%s210 + $0x68] sm:$0xff] %v1387
          %1404 = vst [vmem:[%s210 + $0x70] sm:$0xff] %v1388
          %1405 = vst [vmem:[%s210 + $0x78] sm:$0xff] %v1389
        $region72: #{pyg_net_forward.1} parent=55 // pred_fallthru
          _
      $region56: #{pyg_net_forward.1} parent=35 // pred_fallthru
        _
      %s1406 = smul.u32 16, %s21
      %p1407 = scmp.lt.s32.totalorder %s1406, 15
      %s1408 = scalar_select %p1407, %s1406, 15
      %s1409 = smul.addr %s1408, 8
      %s1410 = scalar_lea.vmem %s4, %s1409
      // Predicated region
      $region73: #{pyg_net_forward.1} parent=35 // pred_check
        %p1411 = pneg %p141
      $region74: #{pyg_net_forward.1} parent=35 // pred_check_branch
        %1413 = sbr.rel (%p1411) target = $region76
      $region75: #{pyg_net_forward.1} parent=35 // pred_region
        %s1414 = smul.u32 16, %s21
      $region76: #{pyg_net_forward.1} parent=35 // pred_fallthru
        _
      // Predicated region
      $region77: #{pyg_net_forward.1} parent=35 // pred_check
        %p1415 = pneg %p141
      $region78: #{pyg_net_forward.1} parent=35 // pred_check_branch
        %1417 = sbr.rel (%p1415) target = $region80
      $region79: #{pyg_net_forward.1} parent=35 // pred_region
        %s1418 = smul.u32 16, %s21
        %p1419 = scmp.lt.s32.totalorder %s1418, 15
        %s1420 = scalar_select %p1419, %s1418, 15
        %s1421 = smul.addr %s1420, 8
        %s1422 = scalar_lea.vmem %s4, %s1421
      $region80: #{pyg_net_forward.1} parent=35 // pred_fallthru
        _
    $region36: #{pyg_net_forward.1} parent=5 // pred_fallthru
      _
    %p1423 = scmp.le.s32.totalorder 2, %s10
    // Predicated region
    $region81: #{pyg_net_forward.1} parent=5 // pred_check
      %p1424 = pneg %p1423
    $region82: #{pyg_net_forward.1} parent=5 // pred_check_branch
      %1426 = sbr.rel (%p1424) target = $region84
    $region83: #{pyg_net_forward.1} parent=5 // pred_region
      %s1427 = ssub.s32 %s10, 2
    $region84: #{pyg_net_forward.1} parent=5 // pred_fallthru
      _
  $region6: #{pyg_net_forward.1} parent=0 // loop_footer
    %s14 = sadd.s32 1, %s10
  $region7: #{pyg_net_forward.1} parent=0 // loop_footer_branch
    %9 = sbr.rel target = $region3
  $region8: #{pyg_net_forward.1} parent=0 // loop_exit
    _

</llo_original>
